<compile_context>
chip_gen: v7x
topology: tpu7x:2x2x1
jax: 0.10.0
libtpu: 0.0.40
codegen_flags: <defaults>
</compile_context>

<pallas_src>
import functools

import jax
import jax.numpy as jnp
import numpy as np
from jax.experimental import pallas as pl
from jax.experimental.pallas import tpu as pltpu

POOL = 4  # nn.AvgPool3d(4)

# The six fixed conv3d kernels of L_spa.__init__ (used by the pure-JAX
# reference; the Pallas kernel realizes them as +/-1 neighbour shifts).
_K_LEFT = np.array([[[0, 0, 0], [0, 0, 0], [0, 0, 0]],
                    [[0, 0, 0], [-1, 1, 0], [0, 0, 0]],
                    [[0, 0, 0], [0, 0, 0], [0, 0, 0]]], np.float32)
_K_RIGHT = np.array([[[0, 0, 0], [0, 0, 0], [0, 0, 0]],
                     [[0, 0, 0], [0, 1, -1], [0, 0, 0]],
                     [[0, 0, 0], [0, 0, 0], [0, 0, 0]]], np.float32)
_K_UP = np.array([[[0, 0, 0], [0, -1, 0], [0, 0, 0]],
                  [[0, 0, 0], [0, 1, 0], [0, 0, 0]],
                  [[0, 0, 0], [0, 0, 0], [0, 0, 0]]], np.float32)
_K_DOWN = np.array([[[0, 0, 0], [0, 0, 0], [0, 0, 0]],
                    [[0, 0, 0], [0, 1, 0], [0, 0, 0]],
                    [[0, 0, 0], [0, -1, 0], [0, 0, 0]]], np.float32)
_K_FRONT = np.array([[[0, 0, 0], [0, 0, 0], [0, 0, 0]],
                     [[0, -1, 0], [0, 1, 0], [0, 0, 0]],
                     [[0, 0, 0], [0, 0, 0], [0, 0, 0]]], np.float32)
_K_BACK = np.array([[[0, 0, 0], [0, 0, 0], [0, 0, 0]],
                    [[0, 0, 0], [0, 1, 0], [0, -1, 0]],
                    [[0, 0, 0], [0, 0, 0], [0, 0, 0]]], np.float32)


def _fused_kernel(org_ref, enh_ref, lane_pool_ref, row_pool_ref, mask_ref,
                  e_ref, acc_ref, *, chunk_d, d_sz, h_sz, w_sz, inv_norm):
    """Fused (channel-mean + AvgPool3d(4) + 6-neighbour stencil) kernel.

    org_ref / enh_ref : (c, chunk_d*POOL, w, l) depth slab of one batch element
    lane_pool_ref     : (l, w_sz)               0/1 pooling matrix along l (lane)
    row_pool_ref      : (chunk_d*h_sz, chunk_d*w) 0/1 depth-block-diag pooling
                                                   matrix along w (sublane)
    mask_ref          : (6, d_sz*h_sz, w_sz)    neighbour-validity masks (f32)
    e_ref             : (d_sz*h_sz, w_sz)       output E for this batch element
    acc_ref           : VMEM scratch (d_sz*h_sz, w_sz) pooled-difference buffer
    """
    j = pl.program_id(1)
    c, slab, w, l = org_ref.shape
    rows = d_sz * h_sz
    k_rows = chunk_d * h_sz

    # ---- streaming pooled-difference pass (dominant cost: reads the slabs) ----
    diff = org_ref[...].astype(jnp.float32) - enh_ref[...].astype(jnp.float32)
    s = jnp.sum(diff, axis=0)                                   # (slab, w, l)
    s = s.reshape(chunk_d, POOL, w, l).sum(axis=1)              # (chunk_d, w, l)
    s = s.reshape(chunk_d * w, l)                               # collapse majors
    # Pool over l (lane) and w (sublane) with tiny exact 0/1 matmuls.  HIGHEST
    # precision => multi-pass f32 on the otherwise-idle MXU, exact to f32
    # rounding; avoids lane/sublane reshapes inside the kernel.
    a = jnp.dot(s, lane_pool_ref[...],
                preferred_element_type=jnp.float32,
                precision=jax.lax.Precision.HIGHEST)            # (chunk_d*w, w_sz)
    p = jnp.dot(row_pool_ref[...], a,
                preferred_element_type=jnp.float32,
                precision=jax.lax.Precision.HIGHEST)            # (chunk_d*h_sz, w_sz)

    start = j * k_rows
    if k_rows % 8 == 0:
        start = pl.multiple_of(start, 8)
    acc_ref[pl.ds(start, k_rows), :] = p * inv_norm

    # ---- 6-neighbour stencil on the tiny pooled volume, once per batch ----
    @pl.when(j == pl.num_programs(1) - 1)
    def _():
        pd = acc_ref[...]                                       # (rows, w_sz)

        def nb(row_shift, lane_shift, mask_idx):
            # roll(x, s)[k] == x[k - s]; wrap-around entries are zeroed by the
            # precomputed masks (reproduces conv3d's zero padding).
            x = pd
            if row_shift % rows:
                x = pltpu.roll(x, row_shift % rows, axis=0)
            if lane_shift % w_sz:
                x = pltpu.roll(x, lane_shift % w_sz, axis=1)
            return x * mask_ref[mask_idx]

        neighbours = (
            nb(0, 1, 0),               # left  : (d, h, w-1)
            nb(0, w_sz - 1, 1),        # right : (d, h, w+1)
            nb(1, 0, 2),               # front : (d, h-1, w)
            nb(rows - 1, 0, 3),        # back  : (d, h+1, w)
            nb(h_sz, 0, 4),            # up    : (d-1, h, w)
            nb(rows - h_sz, 0, 5),     # down  : (d+1, h, w)
        )
        e = jnp.zeros_like(pd)
        for q in neighbours:
            dd = pd - q
            e = e + dd * dd
        e_ref[...] = e


def _choose_chunk_d(d_sz, c, w, l, h_sz, itemsize):
    """Largest pooled-depth chunk (divisor of d_sz) fitting modest VMEM budgets."""
    best = 1
    for cd in range(1, d_sz + 1):
        if d_sz % cd:
            continue
        slab_bytes = c * cd * POOL * w * l * itemsize        # one input slab
        row_pool_bytes = (cd * h_sz) * (cd * w) * 4          # w-pooling matrix
        if slab_bytes <= (2 << 20) and row_pool_bytes <= (1 << 20):
            best = cd
    return best


def _pooling_matrices(l, w, w_sz, h_sz, chunk_d):
    lane_pool = np.zeros((l, w_sz), np.float32)
    lane_pool[np.arange(l), np.arange(l) // POOL] = 1.0
    row_pool = np.zeros((chunk_d * h_sz, chunk_d * w), np.float32)
    for dd in range(chunk_d):
        for ww in range(w):
            row_pool[dd * h_sz + ww // POOL, dd * w + ww] = 1.0
    return lane_pool, row_pool


def _boundary_masks(d_sz, h_sz, w_sz):
    r = np.arange(d_sz * h_sz)
    h_i = (r % h_sz)[:, None]
    d_i = (r // h_sz)[:, None]
    jj = np.arange(w_sz)[None, :]
    rows = np.ones((d_sz * h_sz, 1), np.float32)
    cols = np.ones((1, w_sz), np.float32)
    masks = np.stack([
        rows * (jj >= 1),             # left  valid
        rows * (jj <= w_sz - 2),      # right valid
        (h_i >= 1) * cols,            # front valid
        (h_i <= h_sz - 2) * cols,     # back  valid
        (d_i >= 1) * cols,            # up    valid
        (d_i <= d_sz - 2) * cols,     # down  valid
    ]).astype(np.float32)
    return masks                      # (6, d_sz*h_sz, w_sz)


@jax.jit
def l_spa(org, enhance):
    """Pallas TPU version of L_spa.forward.  org/enhance: (b, c, h, w, l)."""
    b, c, h, w, l = org.shape
    assert org.shape == enhance.shape
    assert h % POOL == 0 and w % POOL == 0 and l % POOL == 0
    d_sz, h_sz, w_sz = h // POOL, w // POOL, l // POOL
    rows = d_sz * h_sz

    itemsize = np.dtype(org.dtype).itemsize
    chunk_d = _choose_chunk_d(d_sz, c, w, l, h_sz, itemsize)
    n_chunks = d_sz // chunk_d
    slab = chunk_d * POOL

    lane_pool, row_pool = _pooling_matrices(l, w, w_sz, h_sz, chunk_d)
    masks = _boundary_masks(d_sz, h_sz, w_sz)

    kernel = functools.partial(_fused_kernel, chunk_d=chunk_d, d_sz=d_sz,
                               h_sz=h_sz, w_sz=w_sz,
                               inv_norm=1.0 / (c * POOL ** 3))

    e = pl.pallas_call(
        kernel,
        out_shape=jax.ShapeDtypeStruct((b, rows, w_sz), jnp.float32),
        grid=(b, n_chunks),
        in_specs=[
            pl.BlockSpec((None, c, slab, w, l), lambda i, j: (i, 0, j, 0, 0)),
            pl.BlockSpec((None, c, slab, w, l), lambda i, j: (i, 0, j, 0, 0)),
            pl.BlockSpec((l, w_sz), lambda i, j: (0, 0)),
            pl.BlockSpec((chunk_d * h_sz, chunk_d * w), lambda i, j: (0, 0)),
            pl.BlockSpec((6, rows, w_sz), lambda i, j: (0, 0, 0)),
        ],
        out_specs=pl.BlockSpec((None, rows, w_sz), lambda i, j: (i, 0, 0)),
        scratch_shapes=[pltpu.VMEM((rows, w_sz), jnp.float32)],
        compiler_params=pltpu.CompilerParams(
            dimension_semantics=("parallel", "arbitrary")),
    )(org, enhance, jnp.asarray(lane_pool), jnp.asarray(row_pool),
      jnp.asarray(masks))

    # Back to the PyTorch output shape (b, 1, h//4, w//4, l//4).
    return e.reshape(b, 1, d_sz, h_sz, w_sz)


def l_spa_reference(org, enhance):
    """Direct pure-JAX translation of the PyTorch forward (for checking)."""
    b, c, h, w, l = org.shape
    om = jnp.mean(org, axis=1, keepdims=True)
    em = jnp.mean(enhance, axis=1, keepdims=True)

    def pool(x):
        return x.reshape(b, 1, h // POOL, POOL, w // POOL, POOL,
                         l // POOL, POOL).mean(axis=(3, 5, 7))

    op, ep = pool(om), pool(em)
    dsz, hsz, wsz = op.shape[2:]

    def conv3d(x, kern):
        xp = jnp.pad(x, ((0, 0), (0, 0), (1, 1), (1, 1), (1, 1)))
        out = jnp.zeros_like(x)
        for a in range(3):
            for bb in range(3):
                for cc in range(3):
                    kv = float(kern[a, bb, cc])
                    if kv != 0.0:
                        out = out + kv * xp[:, :, a:a + dsz, bb:bb + hsz,
                                            cc:cc + wsz]
        return out

    e = jnp.zeros_like(op)
    for kern in (_K_LEFT, _K_RIGHT, _K_UP, _K_DOWN, _K_FRONT, _K_BACK):
        d_o = conv3d(op, kern)
        d_e = conv3d(ep, kern)
        e = e + (d_o - d_e) ** 2
    return e


if __name__ == "__main__":
    key = jax.random.PRNGKey(0)
    k1, k2 = jax.random.split(key)
    shape = (2, 4, 16, 16, 16)   # (b, c, h, w, l)
    org = jax.random.uniform(k1, shape, dtype=jnp.float32)
    enh = jax.random.uniform(k2, shape, dtype=jnp.float32)

    out = jax.block_until_ready(l_spa(org, enh))
    ref = jax.block_until_ready(l_spa_reference(org, enh))
    np.testing.assert_allclose(np.asarray(out), np.asarray(ref),
                               rtol=1e-4, atol=1e-5)
    print("KERNEL_OK")
</pallas_src>

<mosaic_0001>
module attributes {stable_mosaic.version = 11 : i64} {
  func.func @_fused_kernel(%arg0: i32, %arg1: i32, %arg2: memref<1x4x16x16x16xf32, #tpu.memory_space<vmem>>, %arg3: memref<1x4x16x16x16xf32, #tpu.memory_space<vmem>>, %arg4: memref<16x4xf32, #tpu.memory_space<vmem>>, %arg5: memref<16x64xf32, #tpu.memory_space<vmem>>, %arg6: memref<6x16x4xf32, #tpu.memory_space<vmem>>, %arg7: memref<1x16x4xf32, #tpu.memory_space<vmem>>, %arg8: memref<16x4xf32, #tpu.memory_space<vmem>>) attributes {dimension_semantics = [#tpu.dimension_semantics<parallel>, #tpu.dimension_semantics<arbitrary>], iteration_bounds = array<i64: 2, 1>, scalar_prefetch = 0 : i64, scratch_operands = 1 : i64, tpu.core_type = #tpu.core_type<tc>, window_params = [{transform_indices = @transform_0, window_bounds = array<i64: 1, 4, 16, 16, 16>}, {transform_indices = @transform_1, window_bounds = array<i64: 1, 4, 16, 16, 16>}, {pipeline_mode = #tpu.pipeline_mode<synchronous>, transform_indices = @transform_2, window_bounds = array<i64: 16, 4>}, {pipeline_mode = #tpu.pipeline_mode<synchronous>, transform_indices = @transform_3, window_bounds = array<i64: 16, 64>}, {pipeline_mode = #tpu.pipeline_mode<synchronous>, transform_indices = @transform_4, window_bounds = array<i64: 6, 16, 4>}, {transform_indices = @transform_5, window_bounds = array<i64: 1, 16, 4>}]} {
    %c0 = arith.constant 0 : index
    %c0_0 = arith.constant 0 : index
    %c0_1 = arith.constant 0 : index
    %c0_2 = arith.constant 0 : index
    %c0_3 = arith.constant 0 : index
    %0 = vector.load %arg2[%c0, %c0_0, %c0_1, %c0_2, %c0_3] : memref<1x4x16x16x16xf32, #tpu.memory_space<vmem>>, vector<1x4x16x16x16xf32>
    %1 = vector.shape_cast %0 : vector<1x4x16x16x16xf32> to vector<4x16x16x16xf32>
    %c0_4 = arith.constant 0 : index
    %c0_5 = arith.constant 0 : index
    %c0_6 = arith.constant 0 : index
    %c0_7 = arith.constant 0 : index
    %c0_8 = arith.constant 0 : index
    %2 = vector.load %arg3[%c0_4, %c0_5, %c0_6, %c0_7, %c0_8] : memref<1x4x16x16x16xf32, #tpu.memory_space<vmem>>, vector<1x4x16x16x16xf32>
    %3 = vector.shape_cast %2 : vector<1x4x16x16x16xf32> to vector<4x16x16x16xf32>
    %4 = arith.subf %1, %3 : vector<4x16x16x16xf32>
    %cst = arith.constant dense<0.000000e+00> : vector<16x16x16xf32>
    %5 = vector.multi_reduction <add>, %4, %cst [0] : vector<4x16x16x16xf32> to vector<16x16x16xf32>
    %6 = vector.shape_cast %5 : vector<16x16x16xf32> to vector<4x4x16x16xf32>
    %cst_9 = arith.constant dense<0.000000e+00> : vector<4x16x16xf32>
    %7 = vector.multi_reduction <add>, %6, %cst_9 [1] : vector<4x4x16x16xf32> to vector<4x16x16xf32>
    %8 = vector.shape_cast %7 : vector<4x16x16xf32> to vector<64x16xf32>
    %c0_10 = arith.constant 0 : index
    %c0_11 = arith.constant 0 : index
    %9 = vector.load %arg4[%c0_10, %c0_11] : memref<16x4xf32, #tpu.memory_space<vmem>>, vector<16x4xf32>
    %cst_12 = arith.constant dense<0.000000e+00> : vector<64x4xf32>
    %10 = tpu.matmul %8, %9, %cst_12 {dimension_numbers = #tpu.dot_dimension_numbers<[1], [0], [0], [1], [0, 0, 1, 1], [], []>, precision = #tpu.contract_precision<fp32>} : vector<64x16xf32>, vector<16x4xf32>, vector<64x4xf32> -> vector<64x4xf32>
    %c0_13 = arith.constant 0 : index
    %c0_14 = arith.constant 0 : index
    %11 = vector.load %arg5[%c0_13, %c0_14] : memref<16x64xf32, #tpu.memory_space<vmem>>, vector<16x64xf32>
    %cst_15 = arith.constant dense<0.000000e+00> : vector<16x4xf32>
    %12 = tpu.matmul %11, %10, %cst_15 {dimension_numbers = #tpu.dot_dimension_numbers<[1], [0], [0], [1], [0, 0, 1, 1], [], []>, precision = #tpu.contract_precision<fp32>} : vector<16x64xf32>, vector<64x4xf32>, vector<16x4xf32> -> vector<16x4xf32>
    %c16_i32 = arith.constant 16 : i32
    %13 = arith.muli %arg1, %c16_i32 : i32
    %14 = tpu.assume_multiple %13, 8 : i32
    %cst_16 = arith.constant 3.906250e-03 : f32
    %15 = vector.broadcast %cst_16 : f32 to vector<16x4xf32>
    %16 = arith.mulf %12, %15 : vector<16x4xf32>
    %17 = arith.index_cast %14 : i32 to index
    %c0_17 = arith.constant 0 : index
    %18 = vector.load %arg8[%17, %c0_17] : memref<16x4xf32, #tpu.memory_space<vmem>>, vector<16x4xf32>
    tpu.vector_store %arg8[%17, %c0_17], %16 {strides = array<i32>} : memref<16x4xf32, #tpu.memory_space<vmem>>, vector<16x4xf32>,
    %c0_i32 = arith.constant 0 : i32
    %19 = arith.cmpi eq, %arg1, %c0_i32 : i32
    %20 = arith.extui %19 : i1 to i32
    %c0_i32_18 = arith.constant 0 : i32
    %21 = arith.cmpi ne, %20, %c0_i32_18 : i32
    scf.if %21 {
      %c0_19 = arith.constant 0 : index
      %c0_20 = arith.constant 0 : index
      %22 = vector.load %arg8[%c0_19, %c0_20] : memref<16x4xf32, #tpu.memory_space<vmem>>, vector<16x4xf32>
      %c1_i32 = arith.constant 1 : i32
      %23 = tpu.dynamic_rotate %22 by %c1_i32 dim 1 : vector<16x4xf32>, i32 -> vector<16x4xf32>
      %c0_21 = arith.constant 0 : index
      %c0_22 = arith.constant 0 : index
      %c0_23 = arith.constant 0 : index
      %24 = vector.load %arg6[%c0_21, %c0_22, %c0_23] : memref<6x16x4xf32, #tpu.memory_space<vmem>>, vector<1x16x4xf32>
      %25 = vector.shape_cast %24 : vector<1x16x4xf32> to vector<16x4xf32>
      %26 = arith.mulf %23, %25 : vector<16x4xf32>
      %c3_i32 = arith.constant 3 : i32
      %27 = tpu.dynamic_rotate %22 by %c3_i32 dim 1 : vector<16x4xf32>, i32 -> vector<16x4xf32>
      %c1 = arith.constant 1 : index
      %c0_24 = arith.constant 0 : index
      %c0_25 = arith.constant 0 : index
      %28 = vector.load %arg6[%c1, %c0_24, %c0_25] : memref<6x16x4xf32, #tpu.memory_space<vmem>>, vector<1x16x4xf32>
      %29 = vector.shape_cast %28 : vector<1x16x4xf32> to vector<16x4xf32>
      %30 = arith.mulf %27, %29 : vector<16x4xf32>
      %c1_i32_26 = arith.constant 1 : i32
      %31 = tpu.dynamic_rotate %22 by %c1_i32_26 dim 0 : vector<16x4xf32>, i32 -> vector<16x4xf32>
      %c2 = arith.constant 2 : index
      %c0_27 = arith.constant 0 : index
      %c0_28 = arith.constant 0 : index
      %32 = vector.load %arg6[%c2, %c0_27, %c0_28] : memref<6x16x4xf32, #tpu.memory_space<vmem>>, vector<1x16x4xf32>
      %33 = vector.shape_cast %32 : vector<1x16x4xf32> to vector<16x4xf32>
      %34 = arith.mulf %31, %33 : vector<16x4xf32>
      %c15_i32 = arith.constant 15 : i32
      %35 = tpu.dynamic_rotate %22 by %c15_i32 dim 0 : vector<16x4xf32>, i32 -> vector<16x4xf32>
      %c3 = arith.constant 3 : index
      %c0_29 = arith.constant 0 : index
      %c0_30 = arith.constant 0 : index
      %36 = vector.load %arg6[%c3, %c0_29, %c0_30] : memref<6x16x4xf32, #tpu.memory_space<vmem>>, vector<1x16x4xf32>
      %37 = vector.shape_cast %36 : vector<1x16x4xf32> to vector<16x4xf32>
      %38 = arith.mulf %35, %37 : vector<16x4xf32>
      %c4_i32 = arith.constant 4 : i32
      %39 = tpu.dynamic_rotate %22 by %c4_i32 dim 0 : vector<16x4xf32>, i32 -> vector<16x4xf32>
      %c4 = arith.constant 4 : index
      %c0_31 = arith.constant 0 : index
      %c0_32 = arith.constant 0 : index
      %40 = vector.load %arg6[%c4, %c0_31, %c0_32] : memref<6x16x4xf32, #tpu.memory_space<vmem>>, vector<1x16x4xf32>
      %41 = vector.shape_cast %40 : vector<1x16x4xf32> to vector<16x4xf32>
      %42 = arith.mulf %39, %41 : vector<16x4xf32>
      %c12_i32 = arith.constant 12 : i32
      %43 = tpu.dynamic_rotate %22 by %c12_i32 dim 0 : vector<16x4xf32>, i32 -> vector<16x4xf32>
      %c5 = arith.constant 5 : index
      %c0_33 = arith.constant 0 : index
      %c0_34 = arith.constant 0 : index
      %44 = vector.load %arg6[%c5, %c0_33, %c0_34] : memref<6x16x4xf32, #tpu.memory_space<vmem>>, vector<1x16x4xf32>
      %45 = vector.shape_cast %44 : vector<1x16x4xf32> to vector<16x4xf32>
      %46 = arith.mulf %43, %45 : vector<16x4xf32>
      %cst_35 = arith.constant 0.000000e+00 : f32
      %47 = vector.broadcast %cst_35 : f32 to vector<16x4xf32>
      %48 = arith.subf %22, %26 : vector<16x4xf32>
      %49 = arith.mulf %48, %48 : vector<16x4xf32>
      %50 = arith.addf %47, %49 : vector<16x4xf32>
      %51 = arith.subf %22, %30 : vector<16x4xf32>
      %52 = arith.mulf %51, %51 : vector<16x4xf32>
      %53 = arith.addf %50, %52 : vector<16x4xf32>
      %54 = arith.subf %22, %34 : vector<16x4xf32>
      %55 = arith.mulf %54, %54 : vector<16x4xf32>
      %56 = arith.addf %53, %55 : vector<16x4xf32>
      %57 = arith.subf %22, %38 : vector<16x4xf32>
      %58 = arith.mulf %57, %57 : vector<16x4xf32>
      %59 = arith.addf %56, %58 : vector<16x4xf32>
      %60 = arith.subf %22, %42 : vector<16x4xf32>
      %61 = arith.mulf %60, %60 : vector<16x4xf32>
      %62 = arith.addf %59, %61 : vector<16x4xf32>
      %63 = arith.subf %22, %46 : vector<16x4xf32>
      %64 = arith.mulf %63, %63 : vector<16x4xf32>
      %65 = arith.addf %62, %64 : vector<16x4xf32>
      %c0_36 = arith.constant 0 : index
      %c0_37 = arith.constant 0 : index
      %c0_38 = arith.constant 0 : index
      %66 = vector.load %arg7[%c0_36, %c0_37, %c0_38] : memref<1x16x4xf32, #tpu.memory_space<vmem>>, vector<1x16x4xf32>
      %67 = vector.shape_cast %66 : vector<1x16x4xf32> to vector<16x4xf32>
      %68 = vector.shape_cast %65 : vector<16x4xf32> to vector<1x16x4xf32>
      tpu.vector_store %arg7[%c0_36, %c0_37, %c0_38], %68 {strides = array<i32>} : memref<1x16x4xf32, #tpu.memory_space<vmem>>, vector<1x16x4xf32>,
    } else {
    }
    return
  }
  func.func @transform_0(%arg0: i32, %arg1: i32) -> (i32, i32, i32, i32, i32) {
    %c0_i32 = arith.constant 0 : i32
    %c0_i32_0 = arith.constant 0 : i32
    %c0_i32_1 = arith.constant 0 : i32
    %c0_i32_2 = arith.constant 0 : i32
    return %arg0, %c0_i32, %arg1, %c0_i32_0, %c0_i32_1 : i32, i32, i32, i32, i32
  }
  func.func @transform_1(%arg0: i32, %arg1: i32) -> (i32, i32, i32, i32, i32) {
    %c0_i32 = arith.constant 0 : i32
    %c0_i32_0 = arith.constant 0 : i32
    %c0_i32_1 = arith.constant 0 : i32
    %c0_i32_2 = arith.constant 0 : i32
    return %arg0, %c0_i32, %arg1, %c0_i32_0, %c0_i32_1 : i32, i32, i32, i32, i32
  }
  func.func @transform_2(%arg0: i32, %arg1: i32) -> (i32, i32) {
    %c0_i32 = arith.constant 0 : i32
    %c0_i32_0 = arith.constant 0 : i32
    %c0_i32_1 = arith.constant 0 : i32
    return %c0_i32, %c0_i32_0 : i32, i32
  }
  func.func @transform_3(%arg0: i32, %arg1: i32) -> (i32, i32) {
    %c0_i32 = arith.constant 0 : i32
    %c0_i32_0 = arith.constant 0 : i32
    %c0_i32_1 = arith.constant 0 : i32
    return %c0_i32, %c0_i32_0 : i32, i32
  }
  func.func @transform_4(%arg0: i32, %arg1: i32) -> (i32, i32, i32) {
    %c0_i32 = arith.constant 0 : i32
    %c0_i32_0 = arith.constant 0 : i32
    %c0_i32_1 = arith.constant 0 : i32
    %c0_i32_2 = arith.constant 0 : i32
    return %c0_i32, %c0_i32_0, %c0_i32_1 : i32, i32, i32
  }
  func.func @transform_5(%arg0: i32, %arg1: i32) -> (i32, i32, i32) {
    %c0_i32 = arith.constant 0 : i32
    %c0_i32_0 = arith.constant 0 : i32
    %c0_i32_1 = arith.constant 0 : i32
    return %arg0, %c0_i32, %c0_i32_0 : i32, i32, i32
  }
}

</mosaic_0001>

<llo_original>
// kernel: l_spa.1
$region0: #{l_spa.1}
  #allocation0 [shape = 'u32[]', space=smem, size = 0x4, offset = 0x4, fixed_abs, tag = 'smem constant byte address 0x4 - core index']
  #allocation1 [shape = 'u32[144,128]{1,0:T(1,128)}', space=vmem, size = 0x12000, scoped, tag = 'internal scratch']
  #allocation2 [shape = 'f32[16,4]{1,0:T(8,128)}', space=vmem, size = 0x2000, scoped, tag = 'scratch operand']
  %s0 = inlined_call_operand.hbm [shape: f32[2,4,16,16,16], index: 0, kind: input, shape index: {}]
  %s1 = inlined_call_operand.hbm [shape: f32[2,4,16,16,16], index: 1, kind: input, shape index: {}]
  %s2 = inlined_call_operand.hbm [shape: f32[16,4], index: 2, kind: input, shape index: {}]
  %s3 = inlined_call_operand.hbm [shape: f32[16,64], index: 3, kind: input, shape index: {}]
  %s4 = inlined_call_operand.hbm [shape: f32[6,16,4], index: 4, kind: input, shape index: {}]
  %s5 = inlined_call_operand.hbm [shape: f32[2,16,4], index: 5, kind: output, shape index: {}]
  %s6 = sld [smem:[#allocation0]]
  $region77: #{l_spa.1} parent=0
    _
  %s8 = ssub.s32 1, %s6
  %s9 = scalar_select 0, %s8, %s6
  $region1: #{l_spa.1} parent=0
    #allocation3 [shape = 'u8[1048576]{0}', space=vmem, size = 0x100000, scoped, tag = 'input window, operand 0']
    #allocation4 [shape = 's32[2]{0}', space=sflag, size = 0x8, scoped, tag = 'scoped memory for l_spa.1']
    #allocation5 [shape = 's32[2]{0}', space=sflag, size = 0x8, scoped, tag = 'scoped memory for l_spa.1']
    #allocation6 [shape = 'u8[1048576]{0}', space=vmem, size = 0x100000, scoped, tag = 'input window, operand 1']
    #allocation7 [shape = 's32[2]{0}', space=sflag, size = 0x8, scoped, tag = 'scoped memory for l_spa.1']
    #allocation8 [shape = 'u8[8192]{0}', space=vmem, size = 0x2000, scoped, tag = 'input window, operand 2, single buffered']
    #allocation9 [shape = 'u8[8192]{0}', space=vmem, size = 0x2000, scoped, tag = 'input window, operand 3, single buffered']
    #allocation10 [shape = 's32[1]{0}', space=sflag, size = 0x4, scoped, tag = 'scoped memory for l_spa.1']
    #allocation11 [shape = 'u8[49152]{0}', space=vmem, size = 0xc000, scoped, tag = 'input window, operand 4, single buffered']
    #allocation12 [shape = 'u8[16384]{0}', space=vmem, size = 0x4000, scoped, tag = 'output window, operand 0']
    %10 = vsyncpa [#allocation4], 0
    %s11 = scalar_lea.sflag [#allocation4], 1
    %12 = vsyncpa %s11, 0
    %13 = vsyncpa [#allocation7], 0
    %s14 = scalar_lea.sflag [#allocation7], 1
    %15 = vsyncpa %s14, 0
    %16 = vsyncpa [#allocation10], 0
    %17 = vsyncpa [#allocation5], 0
    %s18 = scalar_lea.sflag [#allocation5], 1
    %19 = vsyncpa %s18, 0
    loop: start=0, step=1, limit=4
    $region2: #{l_spa.1} parent=1 // loop_pre_header
      _
    $region3: #{l_spa.1} parent=1 // loop_header
      %s21 = sphi 0, %s25
      %p22 = scmp.ge.s32.totalorder %s21, 4
      %s28 = sphi 0, %s40
      %s29 = sphi 0, %s36
      %s30 = sphi 0, %s28
      %s31 = sphi 0, %s29
      %s32 = sphi 0, %s30
      %s33 = sphi 0, %s31
      %s45 = sphi 0, %s47
      %s48 = sphi 0, %s45
      %s49 = sphi 0, %s48
      %s65 = sphi 0, %s49
      %s73 = sphi 0, %s75
      %s76 = sphi 0, %s73
      %s77 = sphi 0, %s76
      %s93 = sphi 0, %s77
      %s97 = sphi 0, %s97
      %s99 = sphi 0, %s97
      %s100 = sphi 0, %s99
      %s114 = sphi 0, %s100
      %s118 = sphi 0, %s118
      %s120 = sphi 0, %s118
      %s121 = sphi 0, %s120
      %s135 = sphi 0, %s121
      %s139 = sphi 0, %s139
      %s141 = sphi 0, %s139
      %s142 = sphi 0, %s141
      %s156 = sphi 0, %s142
      %s162 = sphi 0, %s164
      %s165 = sphi 0, %s162
      %s166 = sphi 0, %s165
      %s182 = sphi 0, %s166
    $region4: #{l_spa.1} parent=1 // loop_header_branch
      %24 = sbr.rel (%p22) target = $region8
    $region5: #{l_spa.1} parent=1 // loop_body
      %s26 = ssub.s32 %s21, 1
      %s27 = ssub.s32 %s21, 2
      %s34 = sadd.s32 1, %s29
      %p35 = scmp.ge.s32.totalorder %s34, 1
      %s36 = scalar_select %p35, 0, %s34
      %s37 = sadd.s32 1, %s28
      %s38 = scalar_select %p35, %s37, %s28
      %p39 = scmp.ge.s32.totalorder %s38, 2
      %s40 = scalar_select %p39, 0, %s38
      %s41 = ssub.s32 %s28, %s40
      %s42 = ssub.s32 %s29, %s36
      %s43 = sor.u32 %s41, %s42
      %p44 = scmp.eq.s32.totalorder %s43, 0
      %s46 = sadd.s32 %s45, 1
      %s47 = scalar_select %p44, %s45, %s46
      %p50 = pneg %p44
      %p51 = scmp.eq.s32.totalorder %s21, 1
      %p52 = por %p50, %p51
      %p53 = scmp.ne.s32.totalorder %s45, %s48
      %p54 = scmp.eq.s32.totalorder %s21, 0
      %p55 = por %p53, %p54
      %p56 = scmp.ne.s32.totalorder %s45, %s48
      %p57 = scmp.eq.s32.totalorder %s26, 1
      %p58 = por %p56, %p57
      %p59 = scmp.ne.s32.totalorder %s48, %s49
      %p60 = scmp.eq.s32.totalorder %s26, 0
      %p61 = por %p59, %p60
      %p62 = scmp.ne.s32.totalorder %s48, %s49
      %p63 = scmp.eq.s32.totalorder %s27, 1
      %p64 = por %p62, %p63
      %p66 = scmp.ne.s32.totalorder %s49, %s65
      %p67 = scmp.eq.s32.totalorder %s27, 0
      %p68 = por %p66, %p67
      %s69 = ssub.s32 %s28, %s40
      %s70 = ssub.s32 %s29, %s36
      %s71 = sor.u32 %s69, %s70
      %p72 = scmp.eq.s32.totalorder %s71, 0
      %s74 = sadd.s32 %s73, 1
      %s75 = scalar_select %p72, %s73, %s74
      %p78 = pneg %p72
      %p79 = scmp.eq.s32.totalorder %s21, 1
      %p80 = por %p78, %p79
      %p81 = scmp.ne.s32.totalorder %s73, %s76
      %p82 = scmp.eq.s32.totalorder %s21, 0
      %p83 = por %p81, %p82
      %p84 = scmp.ne.s32.totalorder %s73, %s76
      %p85 = scmp.eq.s32.totalorder %s26, 1
      %p86 = por %p84, %p85
      %p87 = scmp.ne.s32.totalorder %s76, %s77
      %p88 = scmp.eq.s32.totalorder %s26, 0
      %p89 = por %p87, %p88
      %p90 = scmp.ne.s32.totalorder %s76, %s77
      %p91 = scmp.eq.s32.totalorder %s27, 1
      %p92 = por %p90, %p91
      %p94 = scmp.ne.s32.totalorder %s77, %s93
      %p95 = scmp.eq.s32.totalorder %s27, 0
      %p96 = por %p94, %p95
      %s98 = sadd.s32 %s97, 1
      %p101 = scmp.eq.s32.totalorder %s21, 1
      %p102 = scmp.ne.s32.totalorder %s97, %s99
      %p103 = scmp.eq.s32.totalorder %s21, 0
      %p104 = por %p102, %p103
      %p105 = scmp.ne.s32.totalorder %s97, %s99
      %p106 = scmp.eq.s32.totalorder %s26, 1
      %p107 = por %p105, %p106
      %p108 = scmp.ne.s32.totalorder %s99, %s100
      %p109 = scmp.eq.s32.totalorder %s26, 0
      %p110 = por %p108, %p109
      %p111 = scmp.ne.s32.totalorder %s99, %s100
      %p112 = scmp.eq.s32.totalorder %s27, 1
      %p113 = por %p111, %p112
      %p115 = scmp.ne.s32.totalorder %s100, %s114
      %p116 = scmp.eq.s32.totalorder %s27, 0
      %p117 = por %p115, %p116
      %s119 = sadd.s32 %s118, 1
      %p122 = scmp.eq.s32.totalorder %s21, 1
      %p123 = scmp.ne.s32.totalorder %s118, %s120
      %p124 = scmp.eq.s32.totalorder %s21, 0
      %p125 = por %p123, %p124
      %p126 = scmp.ne.s32.totalorder %s118, %s120
      %p127 = scmp.eq.s32.totalorder %s26, 1
      %p128 = por %p126, %p127
      %p129 = scmp.ne.s32.totalorder %s120, %s121
      %p130 = scmp.eq.s32.totalorder %s26, 0
      %p131 = por %p129, %p130
      %p132 = scmp.ne.s32.totalorder %s120, %s121
      %p133 = scmp.eq.s32.totalorder %s27, 1
      %p134 = por %p132, %p133
      %p136 = scmp.ne.s32.totalorder %s121, %s135
      %p137 = scmp.eq.s32.totalorder %s27, 0
      %p138 = por %p136, %p137
      %s140 = sadd.s32 %s139, 1
      %p143 = scmp.eq.s32.totalorder %s21, 1
      %p144 = scmp.ne.s32.totalorder %s139, %s141
      %p145 = scmp.eq.s32.totalorder %s21, 0
      %p146 = por %p144, %p145
      %p147 = scmp.ne.s32.totalorder %s139, %s141
      %p148 = scmp.eq.s32.totalorder %s26, 1
      %p149 = por %p147, %p148
      %p150 = scmp.ne.s32.totalorder %s141, %s142
      %p151 = scmp.eq.s32.totalorder %s26, 0
      %p152 = por %p150, %p151
      %p153 = scmp.ne.s32.totalorder %s141, %s142
      %p154 = scmp.eq.s32.totalorder %s27, 1
      %p155 = por %p153, %p154
      %p157 = scmp.ne.s32.totalorder %s142, %s156
      %p158 = scmp.eq.s32.totalorder %s27, 0
      %p159 = por %p157, %p158
      %s160 = ssub.s32 %s28, %s40
      %p161 = scmp.eq.s32.totalorder %s160, 0
      %s163 = sadd.s32 %s162, 1
      %s164 = scalar_select %p161, %s162, %s163
      %p167 = pneg %p161
      %p168 = scmp.eq.s32.totalorder %s21, 1
      %p169 = por %p167, %p168
      %p170 = scmp.ne.s32.totalorder %s162, %s165
      %p171 = scmp.eq.s32.totalorder %s21, 0
      %p172 = por %p170, %p171
      %p173 = scmp.ne.s32.totalorder %s162, %s165
      %p174 = scmp.eq.s32.totalorder %s26, 1
      %p175 = por %p173, %p174
      %p176 = scmp.ne.s32.totalorder %s165, %s166
      %p177 = scmp.eq.s32.totalorder %s26, 0
      %p178 = por %p176, %p177
      %p179 = scmp.ne.s32.totalorder %s165, %s166
      %p180 = scmp.eq.s32.totalorder %s27, 1
      %p181 = por %p179, %p180
      %p183 = scmp.ne.s32.totalorder %s166, %s182
      %p184 = scmp.eq.s32.totalorder %s27, 0
      %p185 = por %p183, %p184
      %p186 = scmp.le.s32.totalorder 1, %s21
      %p187 = scmp.lt.s32.totalorder %s21, 3
      %p188 = pnand %p186, %p187
      %p189 = pneg %p188
      // Predicated region
      $region9: #{l_spa.1} parent=5 // pred_check
        _
      $region10: #{l_spa.1} parent=5 // pred_check_branch
        %191 = sbr.rel (%p188) target = $region12
      $region11: #{l_spa.1} parent=5 // pred_region
        %s192 = ssub.s32 %s21, 1
        // Predicated region
        $region13: #{l_spa.1} parent=11 // pred_check
          %p193 = pneg %p110
        $region14: #{l_spa.1} parent=11 // pred_check_branch
          %195 = sbr.rel (%p193) target = $region16
        $region15: #{l_spa.1} parent=11 // pred_region
          %s197 = ssub.s32 256, 256
          %198 = vsyncadd [#allocation7], %s197
          %s199 = sshll.u32 [#allocation8], 4
          %s200 = int_to_ptr.vmem [resolvable:$true] %s199
          %205 = dma.hbm_to_vmem [thread:$0]  %s2, 256, %s200, [#allocation7], 128, 128, 8
        $region16: #{l_spa.1} parent=11 // pred_fallthru
          _
        // Predicated region
        $region17: #{l_spa.1} parent=11 // pred_check
          %p206 = pneg %p131
        $region18: #{l_spa.1} parent=11 // pred_check_branch
          %208 = sbr.rel (%p206) target = $region20
        $region19: #{l_spa.1} parent=11 // pred_region
          %s210 = ssub.s32 256, 256
          %211 = vsyncadd [#allocation10], %s210
          %s212 = sshll.u32 [#allocation9], 4
          %s213 = int_to_ptr.vmem [resolvable:$true] %s212
          %218 = dma.hbm_to_vmem [thread:$0]  %s3, 256, %s213, [#allocation10], 128, 128, 8
        $region20: #{l_spa.1} parent=11 // pred_fallthru
          _
        // Predicated region
        $region21: #{l_spa.1} parent=11 // pred_check
          %p219 = pneg %p152
        $region22: #{l_spa.1} parent=11 // pred_check_branch
          %221 = sbr.rel (%p219) target = $region24
        $region23: #{l_spa.1} parent=11 // pred_region
          %s223 = ssub.s32 1536, 1536
          %224 = vsyncadd [#allocation10], %s223
          %s225 = sshll.u32 [#allocation11], 4
          %s226 = int_to_ptr.vmem [resolvable:$true] %s225
          %231 = dma.hbm_to_vmem [thread:$0]  %s4, 1536, %s226, [#allocation10], 128, 128, 8
        $region24: #{l_spa.1} parent=11 // pred_fallthru
          _
      $region12: #{l_spa.1} parent=5 // pred_fallthru
        _
      %p232 = scmp.lt.s32.totalorder %s21, 2
      // Predicated region
      $region25: #{l_spa.1} parent=5 // pred_check
        %p233 = pneg %p232
      $region26: #{l_spa.1} parent=5 // pred_check_branch
        %235 = sbr.rel (%p233) target = $region28
      $region27: #{l_spa.1} parent=5 // pred_region
        // Predicated region
        $region29: #{l_spa.1} parent=27 // pred_check
          %p236 = pneg %p55
        $region30: #{l_spa.1} parent=27 // pred_check_branch
          %238 = sbr.rel (%p236) target = $region32
        $region31: #{l_spa.1} parent=27 // pred_region
          %s239 = sand.u32 %s45, 1
          %s240 = scalar_lea.sflag [#allocation4], %s239
          %s241 = sand.u32 %s45, 1
          %s242 = smul.addr %s241, 1024
          %s243 = scalar_lea.vmem [#allocation3], %s242
          %s244 = smul.u32 16, %s29
          %s246 = ssub.s32 16384, 16384
          %247 = vsyncadd %s240, %s246
          %s248 = smul.addr %s244, 2
          %s249 = smul.addr %s28, 128
          %s250 = sadd.s32 %s248, %s249
          %s251 = smul.addr %s250, 128
          %s252 = scalar_lea.hbm %s0, %s251
          %s253 = sshll.u32 %s243, 4
          %s254 = int_to_ptr.vmem [resolvable:$true] %s253
          %259 = dma.hbm_to_vmem [thread:$0]  %s252, 16384, %s254, %s240, 128, 128, 8
        $region32: #{l_spa.1} parent=27 // pred_fallthru
          _
        // Predicated region
        $region33: #{l_spa.1} parent=27 // pred_check
          %p260 = pneg %p83
        $region34: #{l_spa.1} parent=27 // pred_check_branch
          %262 = sbr.rel (%p260) target = $region36
        $region35: #{l_spa.1} parent=27 // pred_region
          %s263 = sand.u32 %s21, 1
          %s264 = scalar_lea.sflag [#allocation7], %s263
          %s265 = sand.u32 %s73, 1
          %s266 = smul.addr %s265, 1024
          %s267 = scalar_lea.vmem [#allocation6], %s266
          %s268 = smul.u32 16, %s29
          %s270 = ssub.s32 16384, 16384
          %271 = vsyncadd %s264, %s270
          %s272 = smul.addr %s268, 2
          %s273 = smul.addr %s28, 128
          %s274 = sadd.s32 %s272, %s273
          %s275 = smul.addr %s274, 128
          %s276 = scalar_lea.hbm %s1, %s275
          %s277 = sshll.u32 %s267, 4
          %s278 = int_to_ptr.vmem [resolvable:$true] %s277
          %283 = dma.hbm_to_vmem [thread:$0]  %s276, 16384, %s278, %s264, 128, 128, 8
        $region36: #{l_spa.1} parent=27 // pred_fallthru
          _
      $region28: #{l_spa.1} parent=5 // pred_fallthru
        _
      %p284 = scmp.le.s32.totalorder 1, %s21
      %p285 = scmp.lt.s32.totalorder %s21, 3
      %p286 = pnand %p284, %p285
      %p287 = pneg %p286
      // Predicated region
      $region37: #{l_spa.1} parent=5 // pred_check
        _
      $region38: #{l_spa.1} parent=5 // pred_check_branch
        %289 = sbr.rel (%p286) target = $region40
      $region39: #{l_spa.1} parent=5 // pred_region
        %s290 = ssub.s32 %s21, 1
        %s291 = sand.u32 %s48, 1
        %s292 = scalar_lea.sflag [#allocation4], %s291
        %s293 = sand.u32 %s48, 1
        %s294 = smul.addr %s293, 1024
        %s295 = scalar_lea.vmem [#allocation3], %s294
        // Predicated region
        $region41: #{l_spa.1} parent=39 // pred_check
          %p296 = pneg %p61
        $region42: #{l_spa.1} parent=39 // pred_check_branch
          %298 = sbr.rel (%p296) target = $region44
        $region43: #{l_spa.1} parent=39 // pred_region
          %299 = dma.done %s292, 16384
        $region44: #{l_spa.1} parent=39 // pred_fallthru
          _
        %s300 = sand.u32 %s26, 1
        %s301 = scalar_lea.sflag [#allocation7], %s300
        %s302 = sand.u32 %s76, 1
        %s303 = smul.addr %s302, 1024
        %s304 = scalar_lea.vmem [#allocation6], %s303
        // Predicated region
        $region45: #{l_spa.1} parent=39 // pred_check
          %p305 = pneg %p89
        $region46: #{l_spa.1} parent=39 // pred_check_branch
          %307 = sbr.rel (%p305) target = $region48
        $region47: #{l_spa.1} parent=39 // pred_region
          %308 = dma.done %s301, 16384
        $region48: #{l_spa.1} parent=39 // pred_fallthru
          _
        // Predicated region
        $region49: #{l_spa.1} parent=39 // pred_check
          %p309 = pneg %p110
        $region50: #{l_spa.1} parent=39 // pred_check_branch
          %311 = sbr.rel (%p309) target = $region52
        $region51: #{l_spa.1} parent=39 // pred_region
          %312 = dma.done [#allocation7], 256
        $region52: #{l_spa.1} parent=39 // pred_fallthru
          _
        // Predicated region
        $region53: #{l_spa.1} parent=39 // pred_check
          %p313 = pneg %p131
        $region54: #{l_spa.1} parent=39 // pred_check_branch
          %315 = sbr.rel (%p313) target = $region56
        $region55: #{l_spa.1} parent=39 // pred_region
          %316 = dma.done [#allocation10], 256
        $region56: #{l_spa.1} parent=39 // pred_fallthru
          _
        // Predicated region
        $region57: #{l_spa.1} parent=39 // pred_check
          %p317 = pneg %p152
        $region58: #{l_spa.1} parent=39 // pred_check_branch
          %319 = sbr.rel (%p317) target = $region60
        $region59: #{l_spa.1} parent=39 // pred_region
          %320 = dma.done [#allocation10], 1536
        $region60: #{l_spa.1} parent=39 // pred_fallthru
          _
        %s321 = sand.u32 %s48, 1
        %s322 = scalar_lea.sflag [#allocation4], %s321
        %s323 = sand.u32 %s48, 1
        %s324 = smul.addr %s323, 1024
        %s325 = scalar_lea.vmem [#allocation3], %s324
        %p326 = pneg %p61
        %p327 = pneg %p58
        %s328 = sand.u32 %s26, 1
        %s329 = scalar_lea.sflag [#allocation7], %s328
        %s330 = sand.u32 %s76, 1
        %s331 = smul.addr %s330, 1024
        %s332 = scalar_lea.vmem [#allocation6], %s331
        %p333 = pneg %p89
        %p334 = pneg %p86
        %p335 = pneg %p110
        %p336 = pneg %p107
        %p337 = pneg %p131
        %p338 = pneg %p128
        %p339 = pneg %p152
        %p340 = pneg %p149
        %p341 = pneg %p178
        %p342 = pneg %p175
        %s343 = sand.u32 %s165, 1
        %s344 = scalar_lea.sflag [#allocation5], %s343
        %s345 = sand.u32 %s165, 1
        %s346 = smul.addr %s345, 16
        %s347 = scalar_lea.vmem [#allocation12], %s346
        %s348 = smul.u32 16, %s31
        %s349 = smul.u32 16, %s31
        %v350 = vld [vmem:[%s295] sm:$0xff]
        %v351 = vld [vmem:[%s295 + $0x8] sm:$0xff]
        %v352 = vld [vmem:[%s295 + $0x10] sm:$0xff]
        %v353 = vld [vmem:[%s295 + $0x18] sm:$0xff]
        %v354 = vld [vmem:[%s295 + $0x20] sm:$0xff]
        %v355 = vld [vmem:[%s295 + $0x28] sm:$0xff]
        %v356 = vld [vmem:[%s295 + $0x30] sm:$0xff]
        %v357 = vld [vmem:[%s295 + $0x38] sm:$0xff]
        %v358 = vld [vmem:[%s295 + $0x40] sm:$0xff]
        %v359 = vld [vmem:[%s295 + $0x48] sm:$0xff]
        %v360 = vld [vmem:[%s295 + $0x50] sm:$0xff]
        %v361 = vld [vmem:[%s295 + $0x58] sm:$0xff]
        %v362 = vld [vmem:[%s295 + $0x60] sm:$0xff]
        %v363 = vld [vmem:[%s295 + $0x68] sm:$0xff]
        %v364 = vld [vmem:[%s295 + $0x70] sm:$0xff]
        %v365 = vld [vmem:[%s295 + $0x78] sm:$0xff]
        %v366 = vld [vmem:[%s295 + $0x80] sm:$0xff]
        %v367 = vld [vmem:[%s295 + $0x88] sm:$0xff]
        %v368 = vld [vmem:[%s295 + $0x90] sm:$0xff]
        %v369 = vld [vmem:[%s295 + $0x98] sm:$0xff]
        %v370 = vld [vmem:[%s295 + $0xa0] sm:$0xff]
        %v371 = vld [vmem:[%s295 + $0xa8] sm:$0xff]
        %v372 = vld [vmem:[%s295 + $0xb0] sm:$0xff]
        %v373 = vld [vmem:[%s295 + $0xb8] sm:$0xff]
        %v374 = vld [vmem:[%s295 + $0xc0] sm:$0xff]
        %v375 = vld [vmem:[%s295 + $0xc8] sm:$0xff]
        %v376 = vld [vmem:[%s295 + $0xd0] sm:$0xff]
        %v377 = vld [vmem:[%s295 + $0xd8] sm:$0xff]
        %v378 = vld [vmem:[%s295 + $0xe0] sm:$0xff]
        %v379 = vld [vmem:[%s295 + $0xe8] sm:$0xff]
        %v380 = vld [vmem:[%s295 + $0xf0] sm:$0xff]
        %v381 = vld [vmem:[%s295 + $0xf8] sm:$0xff]
        %v382 = vld [vmem:[%s295 + $0x100] sm:$0xff]
        %v383 = vld [vmem:[%s295 + $0x108] sm:$0xff]
        %v384 = vld [vmem:[%s295 + $0x110] sm:$0xff]
        %v385 = vld [vmem:[%s295 + $0x118] sm:$0xff]
        %v386 = vld [vmem:[%s295 + $0x120] sm:$0xff]
        %v387 = vld [vmem:[%s295 + $0x128] sm:$0xff]
        %v388 = vld [vmem:[%s295 + $0x130] sm:$0xff]
        %v389 = vld [vmem:[%s295 + $0x138] sm:$0xff]
        %v390 = vld [vmem:[%s295 + $0x140] sm:$0xff]
        %v391 = vld [vmem:[%s295 + $0x148] sm:$0xff]
        %v392 = vld [vmem:[%s295 + $0x150] sm:$0xff]
        %v393 = vld [vmem:[%s295 + $0x158] sm:$0xff]
        %v394 = vld [vmem:[%s295 + $0x160] sm:$0xff]
        %v395 = vld [vmem:[%s295 + $0x168] sm:$0xff]
        %v396 = vld [vmem:[%s295 + $0x170] sm:$0xff]
        %v397 = vld [vmem:[%s295 + $0x178] sm:$0xff]
        %v398 = vld [vmem:[%s295 + $0x180] sm:$0xff]
        %v399 = vld [vmem:[%s295 + $0x188] sm:$0xff]
        %v400 = vld [vmem:[%s295 + $0x190] sm:$0xff]
        %v401 = vld [vmem:[%s295 + $0x198] sm:$0xff]
        %v402 = vld [vmem:[%s295 + $0x1a0] sm:$0xff]
        %v403 = vld [vmem:[%s295 + $0x1a8] sm:$0xff]
        %v404 = vld [vmem:[%s295 + $0x1b0] sm:$0xff]
        %v405 = vld [vmem:[%s295 + $0x1b8] sm:$0xff]
        %v406 = vld [vmem:[%s295 + $0x1c0] sm:$0xff]
        %v407 = vld [vmem:[%s295 + $0x1c8] sm:$0xff]
        %v408 = vld [vmem:[%s295 + $0x1d0] sm:$0xff]
        %v409 = vld [vmem:[%s295 + $0x1d8] sm:$0xff]
        %v410 = vld [vmem:[%s295 + $0x1e0] sm:$0xff]
        %v411 = vld [vmem:[%s295 + $0x1e8] sm:$0xff]
        %v412 = vld [vmem:[%s295 + $0x1f0] sm:$0xff]
        %v413 = vld [vmem:[%s295 + $0x1f8] sm:$0xff]
        %v414 = vld [vmem:[%s295 + $0x200] sm:$0xff]
        %v415 = vld [vmem:[%s295 + $0x208] sm:$0xff]
        %v416 = vld [vmem:[%s295 + $0x210] sm:$0xff]
        %v417 = vld [vmem:[%s295 + $0x218] sm:$0xff]
        %v418 = vld [vmem:[%s295 + $0x220] sm:$0xff]
        %v419 = vld [vmem:[%s295 + $0x228] sm:$0xff]
        %v420 = vld [vmem:[%s295 + $0x230] sm:$0xff]
        %v421 = vld [vmem:[%s295 + $0x238] sm:$0xff]
        %v422 = vld [vmem:[%s295 + $0x240] sm:$0xff]
        %v423 = vld [vmem:[%s295 + $0x248] sm:$0xff]
        %v424 = vld [vmem:[%s295 + $0x250] sm:$0xff]
        %v425 = vld [vmem:[%s295 + $0x258] sm:$0xff]
        %v426 = vld [vmem:[%s295 + $0x260] sm:$0xff]
        %v427 = vld [vmem:[%s295 + $0x268] sm:$0xff]
        %v428 = vld [vmem:[%s295 + $0x270] sm:$0xff]
        %v429 = vld [vmem:[%s295 + $0x278] sm:$0xff]
        %v430 = vld [vmem:[%s295 + $0x280] sm:$0xff]
        %v431 = vld [vmem:[%s295 + $0x288] sm:$0xff]
        %v432 = vld [vmem:[%s295 + $0x290] sm:$0xff]
        %v433 = vld [vmem:[%s295 + $0x298] sm:$0xff]
        %v434 = vld [vmem:[%s295 + $0x2a0] sm:$0xff]
        %v435 = vld [vmem:[%s295 + $0x2a8] sm:$0xff]
        %v436 = vld [vmem:[%s295 + $0x2b0] sm:$0xff]
        %v437 = vld [vmem:[%s295 + $0x2b8] sm:$0xff]
        %v438 = vld [vmem:[%s295 + $0x2c0] sm:$0xff]
        %v439 = vld [vmem:[%s295 + $0x2c8] sm:$0xff]
        %v440 = vld [vmem:[%s295 + $0x2d0] sm:$0xff]
        %v441 = vld [vmem:[%s295 + $0x2d8] sm:$0xff]
        %v442 = vld [vmem:[%s295 + $0x2e0] sm:$0xff]
        %v443 = vld [vmem:[%s295 + $0x2e8] sm:$0xff]
        %v444 = vld [vmem:[%s295 + $0x2f0] sm:$0xff]
        %v445 = vld [vmem:[%s295 + $0x2f8] sm:$0xff]
        %v446 = vld [vmem:[%s295 + $0x300] sm:$0xff]
        %v447 = vld [vmem:[%s295 + $0x308] sm:$0xff]
        %v448 = vld [vmem:[%s295 + $0x310] sm:$0xff]
        %v449 = vld [vmem:[%s295 + $0x318] sm:$0xff]
        %v450 = vld [vmem:[%s295 + $0x320] sm:$0xff]
        %v451 = vld [vmem:[%s295 + $0x328] sm:$0xff]
        %v452 = vld [vmem:[%s295 + $0x330] sm:$0xff]
        %v453 = vld [vmem:[%s295 + $0x338] sm:$0xff]
        %v454 = vld [vmem:[%s295 + $0x340] sm:$0xff]
        %v455 = vld [vmem:[%s295 + $0x348] sm:$0xff]
        %v456 = vld [vmem:[%s295 + $0x350] sm:$0xff]
        %v457 = vld [vmem:[%s295 + $0x358] sm:$0xff]
        %v458 = vld [vmem:[%s295 + $0x360] sm:$0xff]
        %v459 = vld [vmem:[%s295 + $0x368] sm:$0xff]
        %v460 = vld [vmem:[%s295 + $0x370] sm:$0xff]
        %v461 = vld [vmem:[%s295 + $0x378] sm:$0xff]
        %v462 = vld [vmem:[%s295 + $0x380] sm:$0xff]
        %v463 = vld [vmem:[%s295 + $0x388] sm:$0xff]
        %v464 = vld [vmem:[%s295 + $0x390] sm:$0xff]
        %v465 = vld [vmem:[%s295 + $0x398] sm:$0xff]
        %v466 = vld [vmem:[%s295 + $0x3a0] sm:$0xff]
        %v467 = vld [vmem:[%s295 + $0x3a8] sm:$0xff]
        %v468 = vld [vmem:[%s295 + $0x3b0] sm:$0xff]
        %v469 = vld [vmem:[%s295 + $0x3b8] sm:$0xff]
        %v470 = vld [vmem:[%s295 + $0x3c0] sm:$0xff]
        %v471 = vld [vmem:[%s295 + $0x3c8] sm:$0xff]
        %v472 = vld [vmem:[%s295 + $0x3d0] sm:$0xff]
        %v473 = vld [vmem:[%s295 + $0x3d8] sm:$0xff]
        %v474 = vld [vmem:[%s295 + $0x3e0] sm:$0xff]
        %v475 = vld [vmem:[%s295 + $0x3e8] sm:$0xff]
        %v476 = vld [vmem:[%s295 + $0x3f0] sm:$0xff]
        %v477 = vld [vmem:[%s295 + $0x3f8] sm:$0xff]
        %v478 = vld [vmem:[%s304] sm:$0xff]
        %v479 = vld [vmem:[%s304 + $0x8] sm:$0xff]
        %v480 = vld [vmem:[%s304 + $0x10] sm:$0xff]
        %v481 = vld [vmem:[%s304 + $0x18] sm:$0xff]
        %v482 = vld [vmem:[%s304 + $0x20] sm:$0xff]
        %v483 = vld [vmem:[%s304 + $0x28] sm:$0xff]
        %v484 = vld [vmem:[%s304 + $0x30] sm:$0xff]
        %v485 = vld [vmem:[%s304 + $0x38] sm:$0xff]
        %v486 = vld [vmem:[%s304 + $0x40] sm:$0xff]
        %v487 = vld [vmem:[%s304 + $0x48] sm:$0xff]
        %v488 = vld [vmem:[%s304 + $0x50] sm:$0xff]
        %v489 = vld [vmem:[%s304 + $0x58] sm:$0xff]
        %v490 = vld [vmem:[%s304 + $0x60] sm:$0xff]
        %v491 = vld [vmem:[%s304 + $0x68] sm:$0xff]
        %v492 = vld [vmem:[%s304 + $0x70] sm:$0xff]
        %v493 = vld [vmem:[%s304 + $0x78] sm:$0xff]
        %v494 = vld [vmem:[%s304 + $0x80] sm:$0xff]
        %v495 = vld [vmem:[%s304 + $0x88] sm:$0xff]
        %v496 = vld [vmem:[%s304 + $0x90] sm:$0xff]
        %v497 = vld [vmem:[%s304 + $0x98] sm:$0xff]
        %v498 = vld [vmem:[%s304 + $0xa0] sm:$0xff]
        %v499 = vld [vmem:[%s304 + $0xa8] sm:$0xff]
        %v500 = vld [vmem:[%s304 + $0xb0] sm:$0xff]
        %v501 = vld [vmem:[%s304 + $0xb8] sm:$0xff]
        %v502 = vld [vmem:[%s304 + $0xc0] sm:$0xff]
        %v503 = vld [vmem:[%s304 + $0xc8] sm:$0xff]
        %v504 = vld [vmem:[%s304 + $0xd0] sm:$0xff]
        %v505 = vld [vmem:[%s304 + $0xd8] sm:$0xff]
        %v506 = vld [vmem:[%s304 + $0xe0] sm:$0xff]
        %v507 = vld [vmem:[%s304 + $0xe8] sm:$0xff]
        %v508 = vld [vmem:[%s304 + $0xf0] sm:$0xff]
        %v509 = vld [vmem:[%s304 + $0xf8] sm:$0xff]
        %v510 = vld [vmem:[%s304 + $0x100] sm:$0xff]
        %v511 = vld [vmem:[%s304 + $0x108] sm:$0xff]
        %v512 = vld [vmem:[%s304 + $0x110] sm:$0xff]
        %v513 = vld [vmem:[%s304 + $0x118] sm:$0xff]
        %v514 = vld [vmem:[%s304 + $0x120] sm:$0xff]
        %v515 = vld [vmem:[%s304 + $0x128] sm:$0xff]
        %v516 = vld [vmem:[%s304 + $0x130] sm:$0xff]
        %v517 = vld [vmem:[%s304 + $0x138] sm:$0xff]
        %v518 = vld [vmem:[%s304 + $0x140] sm:$0xff]
        %v519 = vld [vmem:[%s304 + $0x148] sm:$0xff]
        %v520 = vld [vmem:[%s304 + $0x150] sm:$0xff]
        %v521 = vld [vmem:[%s304 + $0x158] sm:$0xff]
        %v522 = vld [vmem:[%s304 + $0x160] sm:$0xff]
        %v523 = vld [vmem:[%s304 + $0x168] sm:$0xff]
        %v524 = vld [vmem:[%s304 + $0x170] sm:$0xff]
        %v525 = vld [vmem:[%s304 + $0x178] sm:$0xff]
        %v526 = vld [vmem:[%s304 + $0x180] sm:$0xff]
        %v527 = vld [vmem:[%s304 + $0x188] sm:$0xff]
        %v528 = vld [vmem:[%s304 + $0x190] sm:$0xff]
        %v529 = vld [vmem:[%s304 + $0x198] sm:$0xff]
        %v530 = vld [vmem:[%s304 + $0x1a0] sm:$0xff]
        %v531 = vld [vmem:[%s304 + $0x1a8] sm:$0xff]
        %v532 = vld [vmem:[%s304 + $0x1b0] sm:$0xff]
        %v533 = vld [vmem:[%s304 + $0x1b8] sm:$0xff]
        %v534 = vld [vmem:[%s304 + $0x1c0] sm:$0xff]
        %v535 = vld [vmem:[%s304 + $0x1c8] sm:$0xff]
        %v536 = vld [vmem:[%s304 + $0x1d0] sm:$0xff]
        %v537 = vld [vmem:[%s304 + $0x1d8] sm:$0xff]
        %v538 = vld [vmem:[%s304 + $0x1e0] sm:$0xff]
        %v539 = vld [vmem:[%s304 + $0x1e8] sm:$0xff]
        %v540 = vld [vmem:[%s304 + $0x1f0] sm:$0xff]
        %v541 = vld [vmem:[%s304 + $0x1f8] sm:$0xff]
        %v542 = vld [vmem:[%s304 + $0x200] sm:$0xff]
        %v543 = vld [vmem:[%s304 + $0x208] sm:$0xff]
        %v544 = vld [vmem:[%s304 + $0x210] sm:$0xff]
        %v545 = vld [vmem:[%s304 + $0x218] sm:$0xff]
        %v546 = vld [vmem:[%s304 + $0x220] sm:$0xff]
        %v547 = vld [vmem:[%s304 + $0x228] sm:$0xff]
        %v548 = vld [vmem:[%s304 + $0x230] sm:$0xff]
        %v549 = vld [vmem:[%s304 + $0x238] sm:$0xff]
        %v550 = vld [vmem:[%s304 + $0x240] sm:$0xff]
        %v551 = vld [vmem:[%s304 + $0x248] sm:$0xff]
        %v552 = vld [vmem:[%s304 + $0x250] sm:$0xff]
        %v553 = vld [vmem:[%s304 + $0x258] sm:$0xff]
        %v554 = vld [vmem:[%s304 + $0x260] sm:$0xff]
        %v555 = vld [vmem:[%s304 + $0x268] sm:$0xff]
        %v556 = vld [vmem:[%s304 + $0x270] sm:$0xff]
        %v557 = vld [vmem:[%s304 + $0x278] sm:$0xff]
        %v558 = vld [vmem:[%s304 + $0x280] sm:$0xff]
        %v559 = vld [vmem:[%s304 + $0x288] sm:$0xff]
        %v560 = vld [vmem:[%s304 + $0x290] sm:$0xff]
        %v561 = vld [vmem:[%s304 + $0x298] sm:$0xff]
        %v562 = vld [vmem:[%s304 + $0x2a0] sm:$0xff]
        %v563 = vld [vmem:[%s304 + $0x2a8] sm:$0xff]
        %v564 = vld [vmem:[%s304 + $0x2b0] sm:$0xff]
        %v565 = vld [vmem:[%s304 + $0x2b8] sm:$0xff]
        %v566 = vld [vmem:[%s304 + $0x2c0] sm:$0xff]
        %v567 = vld [vmem:[%s304 + $0x2c8] sm:$0xff]
        %v568 = vld [vmem:[%s304 + $0x2d0] sm:$0xff]
        %v569 = vld [vmem:[%s304 + $0x2d8] sm:$0xff]
        %v570 = vld [vmem:[%s304 + $0x2e0] sm:$0xff]
        %v571 = vld [vmem:[%s304 + $0x2e8] sm:$0xff]
        %v572 = vld [vmem:[%s304 + $0x2f0] sm:$0xff]
        %v573 = vld [vmem:[%s304 + $0x2f8] sm:$0xff]
        %v574 = vld [vmem:[%s304 + $0x300] sm:$0xff]
        %v575 = vld [vmem:[%s304 + $0x308] sm:$0xff]
        %v576 = vld [vmem:[%s304 + $0x310] sm:$0xff]
        %v577 = vld [vmem:[%s304 + $0x318] sm:$0xff]
        %v578 = vld [vmem:[%s304 + $0x320] sm:$0xff]
        %v579 = vld [vmem:[%s304 + $0x328] sm:$0xff]
        %v580 = vld [vmem:[%s304 + $0x330] sm:$0xff]
        %v581 = vld [vmem:[%s304 + $0x338] sm:$0xff]
        %v582 = vld [vmem:[%s304 + $0x340] sm:$0xff]
        %v583 = vld [vmem:[%s304 + $0x348] sm:$0xff]
        %v584 = vld [vmem:[%s304 + $0x350] sm:$0xff]
        %v585 = vld [vmem:[%s304 + $0x358] sm:$0xff]
        %v586 = vld [vmem:[%s304 + $0x360] sm:$0xff]
        %v587 = vld [vmem:[%s304 + $0x368] sm:$0xff]
        %v588 = vld [vmem:[%s304 + $0x370] sm:$0xff]
        %v589 = vld [vmem:[%s304 + $0x378] sm:$0xff]
        %v590 = vld [vmem:[%s304 + $0x380] sm:$0xff]
        %v591 = vld [vmem:[%s304 + $0x388] sm:$0xff]
        %v592 = vld [vmem:[%s304 + $0x390] sm:$0xff]
        %v593 = vld [vmem:[%s304 + $0x398] sm:$0xff]
        %v594 = vld [vmem:[%s304 + $0x3a0] sm:$0xff]
        %v595 = vld [vmem:[%s304 + $0x3a8] sm:$0xff]
        %v596 = vld [vmem:[%s304 + $0x3b0] sm:$0xff]
        %v597 = vld [vmem:[%s304 + $0x3b8] sm:$0xff]
        %v598 = vld [vmem:[%s304 + $0x3c0] sm:$0xff]
        %v599 = vld [vmem:[%s304 + $0x3c8] sm:$0xff]
        %v600 = vld [vmem:[%s304 + $0x3d0] sm:$0xff]
        %v601 = vld [vmem:[%s304 + $0x3d8] sm:$0xff]
        %v602 = vld [vmem:[%s304 + $0x3e0] sm:$0xff]
        %v603 = vld [vmem:[%s304 + $0x3e8] sm:$0xff]
        %v604 = vld [vmem:[%s304 + $0x3f0] sm:$0xff]
        %v605 = vld [vmem:[%s304 + $0x3f8] sm:$0xff]
        %v606 = vsub.f32 %v350, %v478
        %v607 = vsub.f32 %v351, %v479
        %v608 = vsub.f32 %v352, %v480
        %v609 = vsub.f32 %v353, %v481
        %v610 = vsub.f32 %v354, %v482
        %v611 = vsub.f32 %v355, %v483
        %v612 = vsub.f32 %v356, %v484
        %v613 = vsub.f32 %v357, %v485
        %v614 = vsub.f32 %v358, %v486
        %v615 = vsub.f32 %v359, %v487
        %v616 = vsub.f32 %v360, %v488
        %v617 = vsub.f32 %v361, %v489
        %v618 = vsub.f32 %v362, %v490
        %v619 = vsub.f32 %v363, %v491
        %v620 = vsub.f32 %v364, %v492
        %v621 = vsub.f32 %v365, %v493
        %v622 = vsub.f32 %v366, %v494
        %v623 = vsub.f32 %v367, %v495
        %v624 = vsub.f32 %v368, %v496
        %v625 = vsub.f32 %v369, %v497
        %v626 = vsub.f32 %v370, %v498
        %v627 = vsub.f32 %v371, %v499
        %v628 = vsub.f32 %v372, %v500
        %v629 = vsub.f32 %v373, %v501
        %v630 = vsub.f32 %v374, %v502
        %v631 = vsub.f32 %v375, %v503
        %v632 = vsub.f32 %v376, %v504
        %v633 = vsub.f32 %v377, %v505
        %v634 = vsub.f32 %v378, %v506
        %v635 = vsub.f32 %v379, %v507
        %v636 = vsub.f32 %v380, %v508
        %v637 = vsub.f32 %v381, %v509
        %v638 = vsub.f32 %v382, %v510
        %v639 = vsub.f32 %v383, %v511
        %v640 = vsub.f32 %v384, %v512
        %v641 = vsub.f32 %v385, %v513
        %v642 = vsub.f32 %v386, %v514
        %v643 = vsub.f32 %v387, %v515
        %v644 = vsub.f32 %v388, %v516
        %v645 = vsub.f32 %v389, %v517
        %v646 = vsub.f32 %v390, %v518
        %v647 = vsub.f32 %v391, %v519
        %v648 = vsub.f32 %v392, %v520
        %v649 = vsub.f32 %v393, %v521
        %v650 = vsub.f32 %v394, %v522
        %v651 = vsub.f32 %v395, %v523
        %v652 = vsub.f32 %v396, %v524
        %v653 = vsub.f32 %v397, %v525
        %v654 = vsub.f32 %v398, %v526
        %v655 = vsub.f32 %v399, %v527
        %v656 = vsub.f32 %v400, %v528
        %v657 = vsub.f32 %v401, %v529
        %v658 = vsub.f32 %v402, %v530
        %v659 = vsub.f32 %v403, %v531
        %v660 = vsub.f32 %v404, %v532
        %v661 = vsub.f32 %v405, %v533
        %v662 = vsub.f32 %v406, %v534
        %v663 = vsub.f32 %v407, %v535
        %v664 = vsub.f32 %v408, %v536
        %v665 = vsub.f32 %v409, %v537
        %v666 = vsub.f32 %v410, %v538
        %v667 = vsub.f32 %v411, %v539
        %v668 = vsub.f32 %v412, %v540
        %v669 = vsub.f32 %v413, %v541
        %v670 = vsub.f32 %v414, %v542
        %v671 = vsub.f32 %v415, %v543
        %v672 = vsub.f32 %v416, %v544
        %v673 = vsub.f32 %v417, %v545
        %v674 = vsub.f32 %v418, %v546
        %v675 = vsub.f32 %v419, %v547
        %v676 = vsub.f32 %v420, %v548
        %v677 = vsub.f32 %v421, %v549
        %v678 = vsub.f32 %v422, %v550
        %v679 = vsub.f32 %v423, %v551
        %v680 = vsub.f32 %v424, %v552
        %v681 = vsub.f32 %v425, %v553
        %v682 = vsub.f32 %v426, %v554
        %v683 = vsub.f32 %v427, %v555
        %v684 = vsub.f32 %v428, %v556
        %v685 = vsub.f32 %v429, %v557
        %v686 = vsub.f32 %v430, %v558
        %v687 = vsub.f32 %v431, %v559
        %v688 = vsub.f32 %v432, %v560
        %v689 = vsub.f32 %v433, %v561
        %v690 = vsub.f32 %v434, %v562
        %v691 = vsub.f32 %v435, %v563
        %v692 = vsub.f32 %v436, %v564
        %v693 = vsub.f32 %v437, %v565
        %v694 = vsub.f32 %v438, %v566
        %v695 = vsub.f32 %v439, %v567
        %v696 = vsub.f32 %v440, %v568
        %v697 = vsub.f32 %v441, %v569
        %v698 = vsub.f32 %v442, %v570
        %v699 = vsub.f32 %v443, %v571
        %v700 = vsub.f32 %v444, %v572
        %v701 = vsub.f32 %v445, %v573
        %v702 = vsub.f32 %v446, %v574
        %v703 = vsub.f32 %v447, %v575
        %v704 = vsub.f32 %v448, %v576
        %v705 = vsub.f32 %v449, %v577
        %v706 = vsub.f32 %v450, %v578
        %v707 = vsub.f32 %v451, %v579
        %v708 = vsub.f32 %v452, %v580
        %v709 = vsub.f32 %v453, %v581
        %v710 = vsub.f32 %v454, %v582
        %v711 = vsub.f32 %v455, %v583
        %v712 = vsub.f32 %v456, %v584
        %v713 = vsub.f32 %v457, %v585
        %v714 = vsub.f32 %v458, %v586
        %v715 = vsub.f32 %v459, %v587
        %v716 = vsub.f32 %v460, %v588
        %v717 = vsub.f32 %v461, %v589
        %v718 = vsub.f32 %v462, %v590
        %v719 = vsub.f32 %v463, %v591
        %v720 = vsub.f32 %v464, %v592
        %v721 = vsub.f32 %v465, %v593
        %v722 = vsub.f32 %v466, %v594
        %v723 = vsub.f32 %v467, %v595
        %v724 = vsub.f32 %v468, %v596
        %v725 = vsub.f32 %v469, %v597
        %v726 = vsub.f32 %v470, %v598
        %v727 = vsub.f32 %v471, %v599
        %v728 = vsub.f32 %v472, %v600
        %v729 = vsub.f32 %v473, %v601
        %v730 = vsub.f32 %v474, %v602
        %v731 = vsub.f32 %v475, %v603
        %v732 = vsub.f32 %v476, %v604
        %v733 = vsub.f32 %v477, %v605
        %vm734 = vcmask 130048
        %v735 = vsel %vm734, %v606, 0.0
        %v736 = vsel %vm734, %v638, 0.0
        %v737 = vadd.f32 %v735, %v736
        %v738 = vsel %vm734, %v670, 0.0
        %v739 = vadd.f32 %v737, %v738
        %v740 = vsel %vm734, %v702, 0.0
        %v741 = vadd.f32 %v739, %v740
        %v742 = vsel %vm734, %v607, 0.0
        %v743 = vsel %vm734, %v639, 0.0
        %v744 = vadd.f32 %v742, %v743
        %v745 = vsel %vm734, %v671, 0.0
        %v746 = vadd.f32 %v744, %v745
        %v747 = vsel %vm734, %v703, 0.0
        %v748 = vadd.f32 %v746, %v747
        %v749 = vsel %vm734, %v608, 0.0
        %v750 = vsel %vm734, %v640, 0.0
        %v751 = vadd.f32 %v749, %v750
        %v752 = vsel %vm734, %v672, 0.0
        %v753 = vadd.f32 %v751, %v752
        %v754 = vsel %vm734, %v704, 0.0
        %v755 = vadd.f32 %v753, %v754
        %v756 = vsel %vm734, %v609, 0.0
        %v757 = vsel %vm734, %v641, 0.0
        %v758 = vadd.f32 %v756, %v757
        %v759 = vsel %vm734, %v673, 0.0
        %v760 = vadd.f32 %v758, %v759
        %v761 = vsel %vm734, %v705, 0.0
        %v762 = vadd.f32 %v760, %v761
        %v763 = vsel %vm734, %v610, 0.0
        %v764 = vsel %vm734, %v642, 0.0
        %v765 = vadd.f32 %v763, %v764
        %v766 = vsel %vm734, %v674, 0.0
        %v767 = vadd.f32 %v765, %v766
        %v768 = vsel %vm734, %v706, 0.0
        %v769 = vadd.f32 %v767, %v768
        %v770 = vsel %vm734, %v611, 0.0
        %v771 = vsel %vm734, %v643, 0.0
        %v772 = vadd.f32 %v770, %v771
        %v773 = vsel %vm734, %v675, 0.0
        %v774 = vadd.f32 %v772, %v773
        %v775 = vsel %vm734, %v707, 0.0
        %v776 = vadd.f32 %v774, %v775
        %v777 = vsel %vm734, %v612, 0.0
        %v778 = vsel %vm734, %v644, 0.0
        %v779 = vadd.f32 %v777, %v778
        %v780 = vsel %vm734, %v676, 0.0
        %v781 = vadd.f32 %v779, %v780
        %v782 = vsel %vm734, %v708, 0.0
        %v783 = vadd.f32 %v781, %v782
        %v784 = vsel %vm734, %v613, 0.0
        %v785 = vsel %vm734, %v645, 0.0
        %v786 = vadd.f32 %v784, %v785
        %v787 = vsel %vm734, %v677, 0.0
        %v788 = vadd.f32 %v786, %v787
        %v789 = vsel %vm734, %v709, 0.0
        %v790 = vadd.f32 %v788, %v789
        %v791 = vsel %vm734, %v614, 0.0
        %v792 = vsel %vm734, %v646, 0.0
        %v793 = vadd.f32 %v791, %v792
        %v794 = vsel %vm734, %v678, 0.0
        %v795 = vadd.f32 %v793, %v794
        %v796 = vsel %vm734, %v710, 0.0
        %v797 = vadd.f32 %v795, %v796
        %v798 = vsel %vm734, %v615, 0.0
        %v799 = vsel %vm734, %v647, 0.0
        %v800 = vadd.f32 %v798, %v799
        %v801 = vsel %vm734, %v679, 0.0
        %v802 = vadd.f32 %v800, %v801
        %v803 = vsel %vm734, %v711, 0.0
        %v804 = vadd.f32 %v802, %v803
        %v805 = vsel %vm734, %v616, 0.0
        %v806 = vsel %vm734, %v648, 0.0
        %v807 = vadd.f32 %v805, %v806
        %v808 = vsel %vm734, %v680, 0.0
        %v809 = vadd.f32 %v807, %v808
        %v810 = vsel %vm734, %v712, 0.0
        %v811 = vadd.f32 %v809, %v810
        %v812 = vsel %vm734, %v617, 0.0
        %v813 = vsel %vm734, %v649, 0.0
        %v814 = vadd.f32 %v812, %v813
        %v815 = vsel %vm734, %v681, 0.0
        %v816 = vadd.f32 %v814, %v815
        %v817 = vsel %vm734, %v713, 0.0
        %v818 = vadd.f32 %v816, %v817
        %v819 = vsel %vm734, %v618, 0.0
        %v820 = vsel %vm734, %v650, 0.0
        %v821 = vadd.f32 %v819, %v820
        %v822 = vsel %vm734, %v682, 0.0
        %v823 = vadd.f32 %v821, %v822
        %v824 = vsel %vm734, %v714, 0.0
        %v825 = vadd.f32 %v823, %v824
        %v826 = vsel %vm734, %v619, 0.0
        %v827 = vsel %vm734, %v651, 0.0
        %v828 = vadd.f32 %v826, %v827
        %v829 = vsel %vm734, %v683, 0.0
        %v830 = vadd.f32 %v828, %v829
        %v831 = vsel %vm734, %v715, 0.0
        %v832 = vadd.f32 %v830, %v831
        %v833 = vsel %vm734, %v620, 0.0
        %v834 = vsel %vm734, %v652, 0.0
        %v835 = vadd.f32 %v833, %v834
        %v836 = vsel %vm734, %v684, 0.0
        %v837 = vadd.f32 %v835, %v836
        %v838 = vsel %vm734, %v716, 0.0
        %v839 = vadd.f32 %v837, %v838
        %v840 = vsel %vm734, %v621, 0.0
        %v841 = vsel %vm734, %v653, 0.0
        %v842 = vadd.f32 %v840, %v841
        %v843 = vsel %vm734, %v685, 0.0
        %v844 = vadd.f32 %v842, %v843
        %v845 = vsel %vm734, %v717, 0.0
        %v846 = vadd.f32 %v844, %v845
        %v847 = vsel %vm734, %v622, 0.0
        %v848 = vsel %vm734, %v654, 0.0
        %v849 = vadd.f32 %v847, %v848
        %v850 = vsel %vm734, %v686, 0.0
        %v851 = vadd.f32 %v849, %v850
        %v852 = vsel %vm734, %v718, 0.0
        %v853 = vadd.f32 %v851, %v852
        %v854 = vsel %vm734, %v623, 0.0
        %v855 = vsel %vm734, %v655, 0.0
        %v856 = vadd.f32 %v854, %v855
        %v857 = vsel %vm734, %v687, 0.0
        %v858 = vadd.f32 %v856, %v857
        %v859 = vsel %vm734, %v719, 0.0
        %v860 = vadd.f32 %v858, %v859
        %v861 = vsel %vm734, %v624, 0.0
        %v862 = vsel %vm734, %v656, 0.0
        %v863 = vadd.f32 %v861, %v862
        %v864 = vsel %vm734, %v688, 0.0
        %v865 = vadd.f32 %v863, %v864
        %v866 = vsel %vm734, %v720, 0.0
        %v867 = vadd.f32 %v865, %v866
        %v868 = vsel %vm734, %v625, 0.0
        %v869 = vsel %vm734, %v657, 0.0
        %v870 = vadd.f32 %v868, %v869
        %v871 = vsel %vm734, %v689, 0.0
        %v872 = vadd.f32 %v870, %v871
        %v873 = vsel %vm734, %v721, 0.0
        %v874 = vadd.f32 %v872, %v873
        %v875 = vsel %vm734, %v626, 0.0
        %v876 = vsel %vm734, %v658, 0.0
        %v877 = vadd.f32 %v875, %v876
        %v878 = vsel %vm734, %v690, 0.0
        %v879 = vadd.f32 %v877, %v878
        %v880 = vsel %vm734, %v722, 0.0
        %v881 = vadd.f32 %v879, %v880
        %v882 = vsel %vm734, %v627, 0.0
        %v883 = vsel %vm734, %v659, 0.0
        %v884 = vadd.f32 %v882, %v883
        %v885 = vsel %vm734, %v691, 0.0
        %v886 = vadd.f32 %v884, %v885
        %v887 = vsel %vm734, %v723, 0.0
        %v888 = vadd.f32 %v886, %v887
        %v889 = vsel %vm734, %v628, 0.0
        %v890 = vsel %vm734, %v660, 0.0
        %v891 = vadd.f32 %v889, %v890
        %v892 = vsel %vm734, %v692, 0.0
        %v893 = vadd.f32 %v891, %v892
        %v894 = vsel %vm734, %v724, 0.0
        %v895 = vadd.f32 %v893, %v894
        %v896 = vsel %vm734, %v629, 0.0
        %v897 = vsel %vm734, %v661, 0.0
        %v898 = vadd.f32 %v896, %v897
        %v899 = vsel %vm734, %v693, 0.0
        %v900 = vadd.f32 %v898, %v899
        %v901 = vsel %vm734, %v725, 0.0
        %v902 = vadd.f32 %v900, %v901
        %v903 = vsel %vm734, %v630, 0.0
        %v904 = vsel %vm734, %v662, 0.0
        %v905 = vadd.f32 %v903, %v904
        %v906 = vsel %vm734, %v694, 0.0
        %v907 = vadd.f32 %v905, %v906
        %v908 = vsel %vm734, %v726, 0.0
        %v909 = vadd.f32 %v907, %v908
        %v910 = vsel %vm734, %v631, 0.0
        %v911 = vsel %vm734, %v663, 0.0
        %v912 = vadd.f32 %v910, %v911
        %v913 = vsel %vm734, %v695, 0.0
        %v914 = vadd.f32 %v912, %v913
        %v915 = vsel %vm734, %v727, 0.0
        %v916 = vadd.f32 %v914, %v915
        %v917 = vsel %vm734, %v632, 0.0
        %v918 = vsel %vm734, %v664, 0.0
        %v919 = vadd.f32 %v917, %v918
        %v920 = vsel %vm734, %v696, 0.0
        %v921 = vadd.f32 %v919, %v920
        %v922 = vsel %vm734, %v728, 0.0
        %v923 = vadd.f32 %v921, %v922
        %v924 = vsel %vm734, %v633, 0.0
        %v925 = vsel %vm734, %v665, 0.0
        %v926 = vadd.f32 %v924, %v925
        %v927 = vsel %vm734, %v697, 0.0
        %v928 = vadd.f32 %v926, %v927
        %v929 = vsel %vm734, %v729, 0.0
        %v930 = vadd.f32 %v928, %v929
        %v931 = vsel %vm734, %v634, 0.0
        %v932 = vsel %vm734, %v666, 0.0
        %v933 = vadd.f32 %v931, %v932
        %v934 = vsel %vm734, %v698, 0.0
        %v935 = vadd.f32 %v933, %v934
        %v936 = vsel %vm734, %v730, 0.0
        %v937 = vadd.f32 %v935, %v936
        %v938 = vsel %vm734, %v635, 0.0
        %v939 = vsel %vm734, %v667, 0.0
        %v940 = vadd.f32 %v938, %v939
        %v941 = vsel %vm734, %v699, 0.0
        %v942 = vadd.f32 %v940, %v941
        %v943 = vsel %vm734, %v731, 0.0
        %v944 = vadd.f32 %v942, %v943
        %v945 = vsel %vm734, %v636, 0.0
        %v946 = vsel %vm734, %v668, 0.0
        %v947 = vadd.f32 %v945, %v946
        %v948 = vsel %vm734, %v700, 0.0
        %v949 = vadd.f32 %v947, %v948
        %v950 = vsel %vm734, %v732, 0.0
        %v951 = vadd.f32 %v949, %v950
        %v952 = vsel %vm734, %v637, 0.0
        %v953 = vsel %vm734, %v669, 0.0
        %v954 = vadd.f32 %v952, %v953
        %v955 = vsel %vm734, %v701, 0.0
        %v956 = vadd.f32 %v954, %v955
        %v957 = vsel %vm734, %v733, 0.0
        %v958 = vadd.f32 %v956, %v957
        %v959 = vsel %vm734, %v741, 0.0
        %v960 = vsel %vm734, %v755, 0.0
        %v961 = vadd.f32 %v959, %v960
        %v962 = vsel %vm734, %v769, 0.0
        %v963 = vadd.f32 %v961, %v962
        %v964 = vsel %vm734, %v783, 0.0
        %v965 = vadd.f32 %v963, %v964
        %v966 = vsel %vm734, %v748, 0.0
        %v967 = vsel %vm734, %v762, 0.0
        %v968 = vadd.f32 %v966, %v967
        %v969 = vsel %vm734, %v776, 0.0
        %v970 = vadd.f32 %v968, %v969
        %v971 = vsel %vm734, %v790, 0.0
        %v972 = vadd.f32 %v970, %v971
        %v973 = vsel %vm734, %v797, 0.0
        %v974 = vsel %vm734, %v811, 0.0
        %v975 = vadd.f32 %v973, %v974
        %v976 = vsel %vm734, %v825, 0.0
        %v977 = vadd.f32 %v975, %v976
        %v978 = vsel %vm734, %v839, 0.0
        %v979 = vadd.f32 %v977, %v978
        %v980 = vsel %vm734, %v804, 0.0
        %v981 = vsel %vm734, %v818, 0.0
        %v982 = vadd.f32 %v980, %v981
        %v983 = vsel %vm734, %v832, 0.0
        %v984 = vadd.f32 %v982, %v983
        %v985 = vsel %vm734, %v846, 0.0
        %v986 = vadd.f32 %v984, %v985
        %v987 = vsel %vm734, %v853, 0.0
        %v988 = vsel %vm734, %v867, 0.0
        %v989 = vadd.f32 %v987, %v988
        %v990 = vsel %vm734, %v881, 0.0
        %v991 = vadd.f32 %v989, %v990
        %v992 = vsel %vm734, %v895, 0.0
        %v993 = vadd.f32 %v991, %v992
        %v994 = vsel %vm734, %v860, 0.0
        %v995 = vsel %vm734, %v874, 0.0
        %v996 = vadd.f32 %v994, %v995
        %v997 = vsel %vm734, %v888, 0.0
        %v998 = vadd.f32 %v996, %v997
        %v999 = vsel %vm734, %v902, 0.0
        %v1000 = vadd.f32 %v998, %v999
        %v1001 = vsel %vm734, %v909, 0.0
        %v1002 = vsel %vm734, %v923, 0.0
        %v1003 = vadd.f32 %v1001, %v1002
        %v1004 = vsel %vm734, %v937, 0.0
        %v1005 = vadd.f32 %v1003, %v1004
        %v1006 = vsel %vm734, %v951, 0.0
        %v1007 = vadd.f32 %v1005, %v1006
        %v1008 = vsel %vm734, %v916, 0.0
        %v1009 = vsel %vm734, %v930, 0.0
        %v1010 = vadd.f32 %v1008, %v1009
        %v1011 = vsel %vm734, %v944, 0.0
        %v1012 = vadd.f32 %v1010, %v1011
        %v1013 = vsel %vm734, %v958, 0.0
        %v1014 = vadd.f32 %v1012, %v1013
        %v1015 = vld [vmem:[#allocation8] sm:$0xff]
        %v1016 = vld [vmem:[#allocation8 + $0x8] sm:$0xff]
        %v1018 = vsel %vm734, %v965, 0
        %v1021 = vsel %vm734, %v972, 0
        %v1024 = vsel %vm734, %v979, 0
        %v1027 = vsel %vm734, %v986, 0
        %v1030 = vsel %vm734, %v993, 0
        %v1033 = vsel %vm734, %v1000, 0
        %v1036 = vsel %vm734, %v1007, 0
        %v1039 = vsel %vm734, %v1014, 0
        %1041 = vmatprep.subr.mxu0 0.0
        %v1042 = vand.u32 %v1015, 4294901760
        %1043 = vmatpush1.msra.mxu0 %v1042
        %1044 = vmatprep.subr.mxu0 0.0
        %v1045 = vand.u32 %v1016, 4294901760
        %1046 = vmatpush1.msra.mxu0 %v1045
        %1047 = vmatprep.subr.mxu0 0.0
        %1048 = vmatpush1.msra.mxu0 0.0
        %1049 = vmatprep.subr.mxu0 0.0
        %1050 = vmatpush1.msra.mxu0 0.0
        %1051 = vmatprep.subr.mxu0 0.0
        %1052 = vmatpush1.msra.mxu0 0.0
        %1053 = vmatprep.subr.mxu0 0.0
        %1054 = vmatpush1.msra.mxu0 0.0
        %1055 = vmatprep.subr.mxu0 0.0
        %1056 = vmatpush1.msra.mxu0 0.0
        %1057 = vmatprep.subr.mxu0 0.0
        %1058 = vmatpush1.msra.mxu0 0.0
        %1059 = vmatprep.subr.mxu0 0.0
        %1060 = vmatpush1.msra.mxu0 0.0
        %1061 = vmatprep.subr.mxu0 0.0
        %1062 = vmatpush1.msra.mxu0 0.0
        %1063 = vmatprep.subr.mxu0 0.0
        %1064 = vmatpush1.msra.mxu0 0.0
        %1065 = vmatprep.subr.mxu0 0.0
        %1066 = vmatpush1.msra.mxu0 0.0
        %1067 = vmatprep.subr.mxu0 0.0
        %1068 = vmatpush1.msra.mxu0 0.0
        %1069 = vmatprep.subr.mxu0 0.0
        %1070 = vmatpush1.msra.mxu0 0.0
        %1071 = vmatprep.subr.mxu0 0.0
        %1072 = vmatpush1.msra.mxu0 0.0
        %1073 = vmatprep.subr.mxu0 0.0
        %1074 = vmatpush1.msra.mxu0 0.0
        %1075 = vmatprep.subr.mxu0 0.0
        %1076 = vmatpush1.msra.mxu0 0.0
        %1077 = vmatprep.subr.mxu0 0.0
        %1078 = vmatpush1.msra.mxu0 0.0
        %1079 = vmatprep.subr.mxu0 0.0
        %1080 = vmatpush1.msra.mxu0 0.0
        %1081 = vmatprep.subr.mxu0 0.0
        %1082 = vmatpush1.msra.mxu0 0.0
        %1083 = vmatprep.subr.mxu0 0.0
        %1084 = vmatpush1.msra.mxu0 0.0
        %1085 = vmatprep.subr.mxu0 0.0
        %1086 = vmatpush1.msra.mxu0 0.0
        %1087 = vmatprep.subr.mxu0 0.0
        %1088 = vmatpush1.msra.mxu0 0.0
        %1089 = vmatprep.subr.mxu0 0.0
        %1090 = vmatpush1.msra.mxu0 0.0
        %1091 = vmatprep.subr.mxu0 0.0
        %1092 = vmatpush1.msra.mxu0 0.0
        %1093 = vmatprep.subr.mxu0 0.0
        %1094 = vmatpush1.msra.mxu0 0.0
        %1095 = vmatprep.subr.mxu0 0.0
        %1096 = vmatpush1.msra.mxu0 0.0
        %1097 = vmatprep.subr.mxu0 0.0
        %1098 = vmatpush1.msra.mxu0 0.0
        %1099 = vmatprep.subr.mxu0 0.0
        %1100 = vmatpush1.msra.mxu0 0.0
        %1101 = vmatprep.subr.mxu0 0.0
        %1102 = vmatpush1.msra.mxu0 0.0
        %1103 = vmatprep.subr.mxu0 0.0
        %1104 = vmatpush1.msra.mxu0 0.0
        %1105 = vmatprep.subr.mxu0 0.0
        %1106 = vmatpush1.msra.mxu0 0.0
        %1107 = vmatprep.mubr.f32.mxu0 0.0
        %v1108 = vand.u32 %v1018, 4294901760
        %v1109 = vsub.f32 %v1018, %v1108
        %v1110 = vand.u32 %v1109, 4294901760
        %v1111 = vsub.f32 %v1109, %v1110
        %v1112 = vand.u32 %v1111, 4294901760
        %1113 = vmatmul.mubr.f32.gmra.mrb[0].mxu0 %v1112
        %v1114 = vpop.f32.mrb[0].mxu0
        %v1115 = vadd.f32 0.0, %v1114
        %v1116 = vpop.f32.mrb[0].mxu0
        %1117 = vmatprep.mubr.f32.mxu0 0.0
        %v1118 = vand.u32 %v1021, 4294901760
        %v1119 = vsub.f32 %v1021, %v1118
        %v1120 = vand.u32 %v1119, 4294901760
        %v1121 = vsub.f32 %v1119, %v1120
        %v1122 = vand.u32 %v1121, 4294901760
        %1123 = vmatmul.mubr.f32.gmra.mrb[0].mxu0 %v1122
        %v1124 = vpop.f32.mrb[0].mxu0
        %v1125 = vadd.f32 0.0, %v1124
        %v1126 = vpop.f32.mrb[0].mxu0
        %1127 = vmatprep.mubr.f32.mxu0 0.0
        %v1128 = vand.u32 %v1024, 4294901760
        %v1129 = vsub.f32 %v1024, %v1128
        %v1130 = vand.u32 %v1129, 4294901760
        %v1131 = vsub.f32 %v1129, %v1130
        %v1132 = vand.u32 %v1131, 4294901760
        %1133 = vmatmul.mubr.f32.gmra.mrb[0].mxu0 %v1132
        %v1134 = vpop.f32.mrb[0].mxu0
        %v1135 = vadd.f32 0.0, %v1134
        %v1136 = vpop.f32.mrb[0].mxu0
        %1137 = vmatprep.mubr.f32.mxu0 0.0
        %v1138 = vand.u32 %v1027, 4294901760
        %v1139 = vsub.f32 %v1027, %v1138
        %v1140 = vand.u32 %v1139, 4294901760
        %v1141 = vsub.f32 %v1139, %v1140
        %v1142 = vand.u32 %v1141, 4294901760
        %1143 = vmatmul.mubr.f32.gmra.mrb[0].mxu0 %v1142
        %v1144 = vpop.f32.mrb[0].mxu0
        %v1145 = vadd.f32 0.0, %v1144
        %v1146 = vpop.f32.mrb[0].mxu0
        %1147 = vmatprep.mubr.f32.mxu0 0.0
        %v1148 = vand.u32 %v1030, 4294901760
        %v1149 = vsub.f32 %v1030, %v1148
        %v1150 = vand.u32 %v1149, 4294901760
        %v1151 = vsub.f32 %v1149, %v1150
        %v1152 = vand.u32 %v1151, 4294901760
        %1153 = vmatmul.mubr.f32.gmra.mrb[0].mxu0 %v1152
        %v1154 = vpop.f32.mrb[0].mxu0
        %v1155 = vadd.f32 0.0, %v1154
        %v1156 = vpop.f32.mrb[0].mxu0
        %1157 = vmatprep.mubr.f32.mxu0 0.0
        %v1158 = vand.u32 %v1033, 4294901760
        %v1159 = vsub.f32 %v1033, %v1158
        %v1160 = vand.u32 %v1159, 4294901760
        %v1161 = vsub.f32 %v1159, %v1160
        %v1162 = vand.u32 %v1161, 4294901760
        %1163 = vmatmul.mubr.f32.gmra.mrb[0].mxu0 %v1162
        %v1164 = vpop.f32.mrb[0].mxu0
        %v1165 = vadd.f32 0.0, %v1164
        %v1166 = vpop.f32.mrb[0].mxu0
        %1167 = vmatprep.mubr.f32.mxu0 0.0
        %v1168 = vand.u32 %v1036, 4294901760
        %v1169 = vsub.f32 %v1036, %v1168
        %v1170 = vand.u32 %v1169, 4294901760
        %v1171 = vsub.f32 %v1169, %v1170
        %v1172 = vand.u32 %v1171, 4294901760
        %1173 = vmatmul.mubr.f32.gmra.mrb[0].mxu0 %v1172
        %v1174 = vpop.f32.mrb[0].mxu0
        %v1175 = vadd.f32 0.0, %v1174
        %v1176 = vpop.f32.mrb[0].mxu0
        %1177 = vmatprep.mubr.f32.mxu0 0.0
        %v1178 = vand.u32 %v1039, 4294901760
        %v1179 = vsub.f32 %v1039, %v1178
        %v1180 = vand.u32 %v1179, 4294901760
        %v1181 = vsub.f32 %v1179, %v1180
        %v1182 = vand.u32 %v1181, 4294901760
        %1183 = vmatmul.mubr.f32.gmra.mrb[0].mxu0 %v1182
        %v1184 = vpop.f32.mrb[0].mxu0
        %v1185 = vadd.f32 0.0, %v1184
        %v1186 = vpop.f32.mrb[0].mxu0
        %1187 = vdwg.mxu0
        %1188 = vmatprep.subr.mxu0 0.0
        %v1189 = vand.u32 %v1015, 4294901760
        %v1190 = vsub.f32 %v1015, %v1189
        %v1191 = vand.u32 %v1190, 4294901760
        %v1192 = vsub.f32 %v1190, %v1191
        %v1193 = vand.u32 %v1192, 4294901760
        %1194 = vmatpush1.msra.mxu0 %v1193
        %1195 = vmatprep.subr.mxu0 0.0
        %v1196 = vand.u32 %v1016, 4294901760
        %v1197 = vsub.f32 %v1016, %v1196
        %v1198 = vand.u32 %v1197, 4294901760
        %v1199 = vsub.f32 %v1197, %v1198
        %v1200 = vand.u32 %v1199, 4294901760
        %1201 = vmatpush1.msra.mxu0 %v1200
        %1202 = vmatprep.subr.mxu0 0.0
        %1203 = vmatpush1.msra.mxu0 0.0
        %1204 = vmatprep.subr.mxu0 0.0
        %1205 = vmatpush1.msra.mxu0 0.0
        %1206 = vmatprep.subr.mxu0 0.0
        %1207 = vmatpush1.msra.mxu0 0.0
        %1208 = vmatprep.subr.mxu0 0.0
        %1209 = vmatpush1.msra.mxu0 0.0
        %1210 = vmatprep.subr.mxu0 0.0
        %1211 = vmatpush1.msra.mxu0 0.0
        %1212 = vmatprep.subr.mxu0 0.0
        %1213 = vmatpush1.msra.mxu0 0.0
        %1214 = vmatprep.subr.mxu0 0.0
        %1215 = vmatpush1.msra.mxu0 0.0
        %1216 = vmatprep.subr.mxu0 0.0
        %1217 = vmatpush1.msra.mxu0 0.0
        %1218 = vmatprep.subr.mxu0 0.0
        %1219 = vmatpush1.msra.mxu0 0.0
        %1220 = vmatprep.subr.mxu0 0.0
        %1221 = vmatpush1.msra.mxu0 0.0
        %1222 = vmatprep.subr.mxu0 0.0
        %1223 = vmatpush1.msra.mxu0 0.0
        %1224 = vmatprep.subr.mxu0 0.0
        %1225 = vmatpush1.msra.mxu0 0.0
        %1226 = vmatprep.subr.mxu0 0.0
        %1227 = vmatpush1.msra.mxu0 0.0
        %1228 = vmatprep.subr.mxu0 0.0
        %1229 = vmatpush1.msra.mxu0 0.0
        %1230 = vmatprep.subr.mxu0 0.0
        %1231 = vmatpush1.msra.mxu0 0.0
        %1232 = vmatprep.subr.mxu0 0.0
        %1233 = vmatpush1.msra.mxu0 0.0
        %1234 = vmatprep.subr.mxu0 0.0
        %1235 = vmatpush1.msra.mxu0 0.0
        %1236 = vmatprep.subr.mxu0 0.0
        %1237 = vmatpush1.msra.mxu0 0.0
        %1238 = vmatprep.subr.mxu0 0.0
        %1239 = vmatpush1.msra.mxu0 0.0
        %1240 = vmatprep.subr.mxu0 0.0
        %1241 = vmatpush1.msra.mxu0 0.0
        %1242 = vmatprep.subr.mxu0 0.0
        %1243 = vmatpush1.msra.mxu0 0.0
        %1244 = vmatprep.subr.mxu0 0.0
        %1245 = vmatpush1.msra.mxu0 0.0
        %1246 = vmatprep.subr.mxu0 0.0
        %1247 = vmatpush1.msra.mxu0 0.0
        %1248 = vmatprep.subr.mxu0 0.0
        %1249 = vmatpush1.msra.mxu0 0.0
        %1250 = vmatprep.subr.mxu0 0.0
        %1251 = vmatpush1.msra.mxu0 0.0
        %1252 = vmatprep.subr.mxu0 0.0
        %1253 = vmatpush1.msra.mxu0 0.0
        %1254 = vmatprep.subr.mxu0 0.0
        %1255 = vmatpush1.msra.mxu0 0.0
        %1256 = vmatprep.subr.mxu0 0.0
        %1257 = vmatpush1.msra.mxu0 0.0
        %1258 = vmatprep.subr.mxu0 0.0
        %1259 = vmatpush1.msra.mxu0 0.0
        %1260 = vmatprep.subr.mxu0 0.0
        %1261 = vmatpush1.msra.mxu0 0.0
        %1262 = vmatprep.mubr.f32.mxu0 0.0
        %v1263 = vand.u32 %v1018, 4294901760
        %1264 = vmatmul.mubr.f32.gmra.mrb[0].mxu0 %v1263
        %v1265 = vpop.f32.mrb[0].mxu0
        %v1266 = vadd.f32 %v1115, %v1265
        %v1267 = vpop.f32.mrb[0].mxu0
        %1268 = vmatprep.mubr.f32.mxu0 0.0
        %v1269 = vand.u32 %v1021, 4294901760
        %1270 = vmatmul.mubr.f32.gmra.mrb[0].mxu0 %v1269
        %v1271 = vpop.f32.mrb[0].mxu0
        %v1272 = vadd.f32 %v1125, %v1271
        %v1273 = vpop.f32.mrb[0].mxu0
        %1274 = vmatprep.mubr.f32.mxu0 0.0
        %v1275 = vand.u32 %v1024, 4294901760
        %1276 = vmatmul.mubr.f32.gmra.mrb[0].mxu0 %v1275
        %v1277 = vpop.f32.mrb[0].mxu0
        %v1278 = vadd.f32 %v1135, %v1277
        %v1279 = vpop.f32.mrb[0].mxu0
        %1280 = vmatprep.mubr.f32.mxu0 0.0
        %v1281 = vand.u32 %v1027, 4294901760
        %1282 = vmatmul.mubr.f32.gmra.mrb[0].mxu0 %v1281
        %v1283 = vpop.f32.mrb[0].mxu0
        %v1284 = vadd.f32 %v1145, %v1283
        %v1285 = vpop.f32.mrb[0].mxu0
        %1286 = vmatprep.mubr.f32.mxu0 0.0
        %v1287 = vand.u32 %v1030, 4294901760
        %1288 = vmatmul.mubr.f32.gmra.mrb[0].mxu0 %v1287
        %v1289 = vpop.f32.mrb[0].mxu0
        %v1290 = vadd.f32 %v1155, %v1289
        %v1291 = vpop.f32.mrb[0].mxu0
        %1292 = vmatprep.mubr.f32.mxu0 0.0
        %v1293 = vand.u32 %v1033, 4294901760
        %1294 = vmatmul.mubr.f32.gmra.mrb[0].mxu0 %v1293
        %v1295 = vpop.f32.mrb[0].mxu0
        %v1296 = vadd.f32 %v1165, %v1295
        %v1297 = vpop.f32.mrb[0].mxu0
        %1298 = vmatprep.mubr.f32.mxu0 0.0
        %v1299 = vand.u32 %v1036, 4294901760
        %1300 = vmatmul.mubr.f32.gmra.mrb[0].mxu0 %v1299
        %v1301 = vpop.f32.mrb[0].mxu0
        %v1302 = vadd.f32 %v1175, %v1301
        %v1303 = vpop.f32.mrb[0].mxu0
        %1304 = vmatprep.mubr.f32.mxu0 0.0
        %v1305 = vand.u32 %v1039, 4294901760
        %1306 = vmatmul.mubr.f32.gmra.mrb[0].mxu0 %v1305
        %v1307 = vpop.f32.mrb[0].mxu0
        %v1308 = vadd.f32 %v1185, %v1307
        %v1309 = vpop.f32.mrb[0].mxu0
        %1310 = vdwg.mxu0
        %1311 = vmatprep.subr.mxu0 0.0
        %v1312 = vand.u32 %v1015, 4294901760
        %v1313 = vsub.f32 %v1015, %v1312
        %1314 = vmatpush1.msra.mxu0 %v1313
        %1315 = vmatprep.subr.mxu0 0.0
        %v1316 = vand.u32 %v1016, 4294901760
        %v1317 = vsub.f32 %v1016, %v1316
        %1318 = vmatpush1.msra.mxu0 %v1317
        %1319 = vmatprep.subr.mxu0 0.0
        %1320 = vmatpush1.msra.mxu0 0.0
        %1321 = vmatprep.subr.mxu0 0.0
        %1322 = vmatpush1.msra.mxu0 0.0
        %1323 = vmatprep.subr.mxu0 0.0
        %1324 = vmatpush1.msra.mxu0 0.0
        %1325 = vmatprep.subr.mxu0 0.0
        %1326 = vmatpush1.msra.mxu0 0.0
        %1327 = vmatprep.subr.mxu0 0.0
        %1328 = vmatpush1.msra.mxu0 0.0
        %1329 = vmatprep.subr.mxu0 0.0
        %1330 = vmatpush1.msra.mxu0 0.0
        %1331 = vmatprep.subr.mxu0 0.0
        %1332 = vmatpush1.msra.mxu0 0.0
        %1333 = vmatprep.subr.mxu0 0.0
        %1334 = vmatpush1.msra.mxu0 0.0
        %1335 = vmatprep.subr.mxu0 0.0
        %1336 = vmatpush1.msra.mxu0 0.0
        %1337 = vmatprep.subr.mxu0 0.0
        %1338 = vmatpush1.msra.mxu0 0.0
        %1339 = vmatprep.subr.mxu0 0.0
        %1340 = vmatpush1.msra.mxu0 0.0
        %1341 = vmatprep.subr.mxu0 0.0
        %1342 = vmatpush1.msra.mxu0 0.0
        %1343 = vmatprep.subr.mxu0 0.0
        %1344 = vmatpush1.msra.mxu0 0.0
        %1345 = vmatprep.subr.mxu0 0.0
        %1346 = vmatpush1.msra.mxu0 0.0
        %1347 = vmatprep.subr.mxu0 0.0
        %1348 = vmatpush1.msra.mxu0 0.0
        %1349 = vmatprep.subr.mxu0 0.0
        %1350 = vmatpush1.msra.mxu0 0.0
        %1351 = vmatprep.subr.mxu0 0.0
        %1352 = vmatpush1.msra.mxu0 0.0
        %1353 = vmatprep.subr.mxu0 0.0
        %1354 = vmatpush1.msra.mxu0 0.0
        %1355 = vmatprep.subr.mxu0 0.0
        %1356 = vmatpush1.msra.mxu0 0.0
        %1357 = vmatprep.subr.mxu0 0.0
        %1358 = vmatpush1.msra.mxu0 0.0
        %1359 = vmatprep.subr.mxu0 0.0
        %1360 = vmatpush1.msra.mxu0 0.0
        %1361 = vmatprep.subr.mxu0 0.0
        %1362 = vmatpush1.msra.mxu0 0.0
        %1363 = vmatprep.subr.mxu0 0.0
        %1364 = vmatpush1.msra.mxu0 0.0
        %1365 = vmatprep.subr.mxu0 0.0
        %1366 = vmatpush1.msra.mxu0 0.0
        %1367 = vmatprep.subr.mxu0 0.0
        %1368 = vmatpush1.msra.mxu0 0.0
        %1369 = vmatprep.subr.mxu0 0.0
        %1370 = vmatpush1.msra.mxu0 0.0
        %1371 = vmatprep.subr.mxu0 0.0
        %1372 = vmatpush1.msra.mxu0 0.0
        %1373 = vmatprep.subr.mxu0 0.0
        %1374 = vmatpush1.msra.mxu0 0.0
        %1375 = vmatprep.subr.mxu0 0.0
        %1376 = vmatpush1.msra.mxu0 0.0
        %1377 = vmatprep.subr.mxu0 0.0
        %1378 = vmatpush1.msra.mxu0 0.0
        %1379 = vmatprep.mubr.f32.mxu0 0.0
        %v1380 = vand.u32 %v1018, 4294901760
        %v1381 = vsub.f32 %v1018, %v1380
        %1382 = vmatmul.mubr.f32.gmra.mrb[0].mxu0 %v1381
        %v1383 = vpop.f32.mrb[0].mxu0
        %v1384 = vadd.f32 %v1266, %v1383
        %v1385 = vpop.f32.mrb[0].mxu0
        %1386 = vmatprep.mubr.f32.mxu0 0.0
        %v1387 = vand.u32 %v1021, 4294901760
        %v1388 = vsub.f32 %v1021, %v1387
        %1389 = vmatmul.mubr.f32.gmra.mrb[0].mxu0 %v1388
        %v1390 = vpop.f32.mrb[0].mxu0
        %v1391 = vadd.f32 %v1272, %v1390
        %v1392 = vpop.f32.mrb[0].mxu0
        %1393 = vmatprep.mubr.f32.mxu0 0.0
        %v1394 = vand.u32 %v1024, 4294901760
        %v1395 = vsub.f32 %v1024, %v1394
        %1396 = vmatmul.mubr.f32.gmra.mrb[0].mxu0 %v1395
        %v1397 = vpop.f32.mrb[0].mxu0
        %v1398 = vadd.f32 %v1278, %v1397
        %v1399 = vpop.f32.mrb[0].mxu0
        %1400 = vmatprep.mubr.f32.mxu0 0.0
        %v1401 = vand.u32 %v1027, 4294901760
        %v1402 = vsub.f32 %v1027, %v1401
        %1403 = vmatmul.mubr.f32.gmra.mrb[0].mxu0 %v1402
        %v1404 = vpop.f32.mrb[0].mxu0
        %v1405 = vadd.f32 %v1284, %v1404
        %v1406 = vpop.f32.mrb[0].mxu0
        %1407 = vmatprep.mubr.f32.mxu0 0.0
        %v1408 = vand.u32 %v1030, 4294901760
        %v1409 = vsub.f32 %v1030, %v1408
        %1410 = vmatmul.mubr.f32.gmra.mrb[0].mxu0 %v1409
        %v1411 = vpop.f32.mrb[0].mxu0
        %v1412 = vadd.f32 %v1290, %v1411
        %v1413 = vpop.f32.mrb[0].mxu0
        %1414 = vmatprep.mubr.f32.mxu0 0.0
        %v1415 = vand.u32 %v1033, 4294901760
        %v1416 = vsub.f32 %v1033, %v1415
        %1417 = vmatmul.mubr.f32.gmra.mrb[0].mxu0 %v1416
        %v1418 = vpop.f32.mrb[0].mxu0
        %v1419 = vadd.f32 %v1296, %v1418
        %v1420 = vpop.f32.mrb[0].mxu0
        %1421 = vmatprep.mubr.f32.mxu0 0.0
        %v1422 = vand.u32 %v1036, 4294901760
        %v1423 = vsub.f32 %v1036, %v1422
        %1424 = vmatmul.mubr.f32.gmra.mrb[0].mxu0 %v1423
        %v1425 = vpop.f32.mrb[0].mxu0
        %v1426 = vadd.f32 %v1302, %v1425
        %v1427 = vpop.f32.mrb[0].mxu0
        %1428 = vmatprep.mubr.f32.mxu0 0.0
        %v1429 = vand.u32 %v1039, 4294901760
        %v1430 = vsub.f32 %v1039, %v1429
        %1431 = vmatmul.mubr.f32.gmra.mrb[0].mxu0 %v1430
        %v1432 = vpop.f32.mrb[0].mxu0
        %v1433 = vadd.f32 %v1308, %v1432
        %v1434 = vpop.f32.mrb[0].mxu0
        %1435 = vdwg.mxu0
        %1436 = vmatprep.subr.mxu0 0.0
        %v1437 = vand.u32 %v1015, 4294901760
        %1438 = vmatpush1.msra.mxu0 %v1437
        %1439 = vmatprep.subr.mxu0 0.0
        %v1440 = vand.u32 %v1016, 4294901760
        %1441 = vmatpush1.msra.mxu0 %v1440
        %1442 = vmatprep.subr.mxu0 0.0
        %1443 = vmatpush1.msra.mxu0 0.0
        %1444 = vmatprep.subr.mxu0 0.0
        %1445 = vmatpush1.msra.mxu0 0.0
        %1446 = vmatprep.subr.mxu0 0.0
        %1447 = vmatpush1.msra.mxu0 0.0
        %1448 = vmatprep.subr.mxu0 0.0
        %1449 = vmatpush1.msra.mxu0 0.0
        %1450 = vmatprep.subr.mxu0 0.0
        %1451 = vmatpush1.msra.mxu0 0.0
        %1452 = vmatprep.subr.mxu0 0.0
        %1453 = vmatpush1.msra.mxu0 0.0
        %1454 = vmatprep.subr.mxu0 0.0
        %1455 = vmatpush1.msra.mxu0 0.0
        %1456 = vmatprep.subr.mxu0 0.0
        %1457 = vmatpush1.msra.mxu0 0.0
        %1458 = vmatprep.subr.mxu0 0.0
        %1459 = vmatpush1.msra.mxu0 0.0
        %1460 = vmatprep.subr.mxu0 0.0
        %1461 = vmatpush1.msra.mxu0 0.0
        %1462 = vmatprep.subr.mxu0 0.0
        %1463 = vmatpush1.msra.mxu0 0.0
        %1464 = vmatprep.subr.mxu0 0.0
        %1465 = vmatpush1.msra.mxu0 0.0
        %1466 = vmatprep.subr.mxu0 0.0
        %1467 = vmatpush1.msra.mxu0 0.0
        %1468 = vmatprep.subr.mxu0 0.0
        %1469 = vmatpush1.msra.mxu0 0.0
        %1470 = vmatprep.subr.mxu0 0.0
        %1471 = vmatpush1.msra.mxu0 0.0
        %1472 = vmatprep.subr.mxu0 0.0
        %1473 = vmatpush1.msra.mxu0 0.0
        %1474 = vmatprep.subr.mxu0 0.0
        %1475 = vmatpush1.msra.mxu0 0.0
        %1476 = vmatprep.subr.mxu0 0.0
        %1477 = vmatpush1.msra.mxu0 0.0
        %1478 = vmatprep.subr.mxu0 0.0
        %1479 = vmatpush1.msra.mxu0 0.0
        %1480 = vmatprep.subr.mxu0 0.0
        %1481 = vmatpush1.msra.mxu0 0.0
        %1482 = vmatprep.subr.mxu0 0.0
        %1483 = vmatpush1.msra.mxu0 0.0
        %1484 = vmatprep.subr.mxu0 0.0
        %1485 = vmatpush1.msra.mxu0 0.0
        %1486 = vmatprep.subr.mxu0 0.0
        %1487 = vmatpush1.msra.mxu0 0.0
        %1488 = vmatprep.subr.mxu0 0.0
        %1489 = vmatpush1.msra.mxu0 0.0
        %1490 = vmatprep.subr.mxu0 0.0
        %1491 = vmatpush1.msra.mxu0 0.0
        %1492 = vmatprep.subr.mxu0 0.0
        %1493 = vmatpush1.msra.mxu0 0.0
        %1494 = vmatprep.subr.mxu0 0.0
        %1495 = vmatpush1.msra.mxu0 0.0
        %1496 = vmatprep.subr.mxu0 0.0
        %1497 = vmatpush1.msra.mxu0 0.0
        %1498 = vmatprep.subr.mxu0 0.0
        %1499 = vmatpush1.msra.mxu0 0.0
        %1500 = vmatprep.subr.mxu0 0.0
        %1501 = vmatpush1.msra.mxu0 0.0
        %1502 = vmatprep.mubr.f32.mxu0 0.0
        %v1503 = vand.u32 %v1018, 4294901760
        %v1504 = vsub.f32 %v1018, %v1503
        %v1505 = vand.u32 %v1504, 4294901760
        %1506 = vmatmul.mubr.f32.gmra.mrb[0].mxu0 %v1505
        %v1507 = vpop.f32.mrb[0].mxu0
        %v1508 = vadd.f32 %v1384, %v1507
        %v1509 = vpop.f32.mrb[0].mxu0
        %1510 = vmatprep.mubr.f32.mxu0 0.0
        %v1511 = vand.u32 %v1021, 4294901760
        %v1512 = vsub.f32 %v1021, %v1511
        %v1513 = vand.u32 %v1512, 4294901760
        %1514 = vmatmul.mubr.f32.gmra.mrb[0].mxu0 %v1513
        %v1515 = vpop.f32.mrb[0].mxu0
        %v1516 = vadd.f32 %v1391, %v1515
        %v1517 = vpop.f32.mrb[0].mxu0
        %1518 = vmatprep.mubr.f32.mxu0 0.0
        %v1519 = vand.u32 %v1024, 4294901760
        %v1520 = vsub.f32 %v1024, %v1519
        %v1521 = vand.u32 %v1520, 4294901760
        %1522 = vmatmul.mubr.f32.gmra.mrb[0].mxu0 %v1521
        %v1523 = vpop.f32.mrb[0].mxu0
        %v1524 = vadd.f32 %v1398, %v1523
        %v1525 = vpop.f32.mrb[0].mxu0
        %1526 = vmatprep.mubr.f32.mxu0 0.0
        %v1527 = vand.u32 %v1027, 4294901760
        %v1528 = vsub.f32 %v1027, %v1527
        %v1529 = vand.u32 %v1528, 4294901760
        %1530 = vmatmul.mubr.f32.gmra.mrb[0].mxu0 %v1529
        %v1531 = vpop.f32.mrb[0].mxu0
        %v1532 = vadd.f32 %v1405, %v1531
        %v1533 = vpop.f32.mrb[0].mxu0
        %1534 = vmatprep.mubr.f32.mxu0 0.0
        %v1535 = vand.u32 %v1030, 4294901760
        %v1536 = vsub.f32 %v1030, %v1535
        %v1537 = vand.u32 %v1536, 4294901760
        %1538 = vmatmul.mubr.f32.gmra.mrb[0].mxu0 %v1537
        %v1539 = vpop.f32.mrb[0].mxu0
        %v1540 = vadd.f32 %v1412, %v1539
        %v1541 = vpop.f32.mrb[0].mxu0
        %1542 = vmatprep.mubr.f32.mxu0 0.0
        %v1543 = vand.u32 %v1033, 4294901760
        %v1544 = vsub.f32 %v1033, %v1543
        %v1545 = vand.u32 %v1544, 4294901760
        %1546 = vmatmul.mubr.f32.gmra.mrb[0].mxu0 %v1545
        %v1547 = vpop.f32.mrb[0].mxu0
        %v1548 = vadd.f32 %v1419, %v1547
        %v1549 = vpop.f32.mrb[0].mxu0
        %1550 = vmatprep.mubr.f32.mxu0 0.0
        %v1551 = vand.u32 %v1036, 4294901760
        %v1552 = vsub.f32 %v1036, %v1551
        %v1553 = vand.u32 %v1552, 4294901760
        %1554 = vmatmul.mubr.f32.gmra.mrb[0].mxu0 %v1553
        %v1555 = vpop.f32.mrb[0].mxu0
        %v1556 = vadd.f32 %v1426, %v1555
        %v1557 = vpop.f32.mrb[0].mxu0
        %1558 = vmatprep.mubr.f32.mxu0 0.0
        %v1559 = vand.u32 %v1039, 4294901760
        %v1560 = vsub.f32 %v1039, %v1559
        %v1561 = vand.u32 %v1560, 4294901760
        %1562 = vmatmul.mubr.f32.gmra.mrb[0].mxu0 %v1561
        %v1563 = vpop.f32.mrb[0].mxu0
        %v1564 = vadd.f32 %v1433, %v1563
        %v1565 = vpop.f32.mrb[0].mxu0
        %1566 = vdwg.mxu0
        %1567 = vmatprep.subr.mxu0 0.0
        %v1568 = vand.u32 %v1015, 4294901760
        %v1569 = vsub.f32 %v1015, %v1568
        %v1570 = vand.u32 %v1569, 4294901760
        %1571 = vmatpush1.msra.mxu0 %v1570
        %1572 = vmatprep.subr.mxu0 0.0
        %v1573 = vand.u32 %v1016, 4294901760
        %v1574 = vsub.f32 %v1016, %v1573
        %v1575 = vand.u32 %v1574, 4294901760
        %1576 = vmatpush1.msra.mxu0 %v1575
        %1577 = vmatprep.subr.mxu0 0.0
        %1578 = vmatpush1.msra.mxu0 0.0
        %1579 = vmatprep.subr.mxu0 0.0
        %1580 = vmatpush1.msra.mxu0 0.0
        %1581 = vmatprep.subr.mxu0 0.0
        %1582 = vmatpush1.msra.mxu0 0.0
        %1583 = vmatprep.subr.mxu0 0.0
        %1584 = vmatpush1.msra.mxu0 0.0
        %1585 = vmatprep.subr.mxu0 0.0
        %1586 = vmatpush1.msra.mxu0 0.0
        %1587 = vmatprep.subr.mxu0 0.0
        %1588 = vmatpush1.msra.mxu0 0.0
        %1589 = vmatprep.subr.mxu0 0.0
        %1590 = vmatpush1.msra.mxu0 0.0
        %1591 = vmatprep.subr.mxu0 0.0
        %1592 = vmatpush1.msra.mxu0 0.0
        %1593 = vmatprep.subr.mxu0 0.0
        %1594 = vmatpush1.msra.mxu0 0.0
        %1595 = vmatprep.subr.mxu0 0.0
        %1596 = vmatpush1.msra.mxu0 0.0
        %1597 = vmatprep.subr.mxu0 0.0
        %1598 = vmatpush1.msra.mxu0 0.0
        %1599 = vmatprep.subr.mxu0 0.0
        %1600 = vmatpush1.msra.mxu0 0.0
        %1601 = vmatprep.subr.mxu0 0.0
        %1602 = vmatpush1.msra.mxu0 0.0
        %1603 = vmatprep.subr.mxu0 0.0
        %1604 = vmatpush1.msra.mxu0 0.0
        %1605 = vmatprep.subr.mxu0 0.0
        %1606 = vmatpush1.msra.mxu0 0.0
        %1607 = vmatprep.subr.mxu0 0.0
        %1608 = vmatpush1.msra.mxu0 0.0
        %1609 = vmatprep.subr.mxu0 0.0
        %1610 = vmatpush1.msra.mxu0 0.0
        %1611 = vmatprep.subr.mxu0 0.0
        %1612 = vmatpush1.msra.mxu0 0.0
        %1613 = vmatprep.subr.mxu0 0.0
        %1614 = vmatpush1.msra.mxu0 0.0
        %1615 = vmatprep.subr.mxu0 0.0
        %1616 = vmatpush1.msra.mxu0 0.0
        %1617 = vmatprep.subr.mxu0 0.0
        %1618 = vmatpush1.msra.mxu0 0.0
        %1619 = vmatprep.subr.mxu0 0.0
        %1620 = vmatpush1.msra.mxu0 0.0
        %1621 = vmatprep.subr.mxu0 0.0
        %1622 = vmatpush1.msra.mxu0 0.0
        %1623 = vmatprep.subr.mxu0 0.0
        %1624 = vmatpush1.msra.mxu0 0.0
        %1625 = vmatprep.subr.mxu0 0.0
        %1626 = vmatpush1.msra.mxu0 0.0
        %1627 = vmatprep.subr.mxu0 0.0
        %1628 = vmatpush1.msra.mxu0 0.0
        %1629 = vmatprep.subr.mxu0 0.0
        %1630 = vmatpush1.msra.mxu0 0.0
        %1631 = vmatprep.subr.mxu0 0.0
        %1632 = vmatpush1.msra.mxu0 0.0
        %1633 = vmatprep.subr.mxu0 0.0
        %1634 = vmatpush1.msra.mxu0 0.0
        %1635 = vmatprep.subr.mxu0 0.0
        %1636 = vmatpush1.msra.mxu0 0.0
        %1637 = vmatprep.mubr.f32.mxu0 0.0
        %v1638 = vand.u32 %v1018, 4294901760
        %1639 = vmatmul.mubr.f32.gmra.mrb[0].mxu0 %v1638
        %v1640 = vpop.f32.mrb[0].mxu0
        %v1641 = vadd.f32 %v1508, %v1640
        %v1642 = vpop.f32.mrb[0].mxu0
        %1643 = vmatprep.mubr.f32.mxu0 0.0
        %v1644 = vand.u32 %v1021, 4294901760
        %1645 = vmatmul.mubr.f32.gmra.mrb[0].mxu0 %v1644
        %v1646 = vpop.f32.mrb[0].mxu0
        %v1647 = vadd.f32 %v1516, %v1646
        %v1648 = vpop.f32.mrb[0].mxu0
        %1649 = vmatprep.mubr.f32.mxu0 0.0
        %v1650 = vand.u32 %v1024, 4294901760
        %1651 = vmatmul.mubr.f32.gmra.mrb[0].mxu0 %v1650
        %v1652 = vpop.f32.mrb[0].mxu0
        %v1653 = vadd.f32 %v1524, %v1652
        %v1654 = vpop.f32.mrb[0].mxu0
        %1655 = vmatprep.mubr.f32.mxu0 0.0
        %v1656 = vand.u32 %v1027, 4294901760
        %1657 = vmatmul.mubr.f32.gmra.mrb[0].mxu0 %v1656
        %v1658 = vpop.f32.mrb[0].mxu0
        %v1659 = vadd.f32 %v1532, %v1658
        %v1660 = vpop.f32.mrb[0].mxu0
        %1661 = vmatprep.mubr.f32.mxu0 0.0
        %v1662 = vand.u32 %v1030, 4294901760
        %1663 = vmatmul.mubr.f32.gmra.mrb[0].mxu0 %v1662
        %v1664 = vpop.f32.mrb[0].mxu0
        %v1665 = vadd.f32 %v1540, %v1664
        %v1666 = vpop.f32.mrb[0].mxu0
        %1667 = vmatprep.mubr.f32.mxu0 0.0
        %v1668 = vand.u32 %v1033, 4294901760
        %1669 = vmatmul.mubr.f32.gmra.mrb[0].mxu0 %v1668
        %v1670 = vpop.f32.mrb[0].mxu0
        %v1671 = vadd.f32 %v1548, %v1670
        %v1672 = vpop.f32.mrb[0].mxu0
        %1673 = vmatprep.mubr.f32.mxu0 0.0
        %v1674 = vand.u32 %v1036, 4294901760
        %1675 = vmatmul.mubr.f32.gmra.mrb[0].mxu0 %v1674
        %v1676 = vpop.f32.mrb[0].mxu0
        %v1677 = vadd.f32 %v1556, %v1676
        %v1678 = vpop.f32.mrb[0].mxu0
        %1679 = vmatprep.mubr.f32.mxu0 0.0
        %v1680 = vand.u32 %v1039, 4294901760
        %1681 = vmatmul.mubr.f32.gmra.mrb[0].mxu0 %v1680
        %v1682 = vpop.f32.mrb[0].mxu0
        %v1683 = vadd.f32 %v1564, %v1682
        %v1684 = vpop.f32.mrb[0].mxu0
        %1685 = vdwg.mxu0
        %1686 = vmatprep.subr.mxu0 0.0
        %v1687 = vand.u32 %v1015, 4294901760
        %1688 = vmatpush1.msra.mxu0 %v1687
        %1689 = vmatprep.subr.mxu0 0.0
        %v1690 = vand.u32 %v1016, 4294901760
        %1691 = vmatpush1.msra.mxu0 %v1690
        %1692 = vmatprep.subr.mxu0 0.0
        %1693 = vmatpush1.msra.mxu0 0.0
        %1694 = vmatprep.subr.mxu0 0.0
        %1695 = vmatpush1.msra.mxu0 0.0
        %1696 = vmatprep.subr.mxu0 0.0
        %1697 = vmatpush1.msra.mxu0 0.0
        %1698 = vmatprep.subr.mxu0 0.0
        %1699 = vmatpush1.msra.mxu0 0.0
        %1700 = vmatprep.subr.mxu0 0.0
        %1701 = vmatpush1.msra.mxu0 0.0
        %1702 = vmatprep.subr.mxu0 0.0
        %1703 = vmatpush1.msra.mxu0 0.0
        %1704 = vmatprep.subr.mxu0 0.0
        %1705 = vmatpush1.msra.mxu0 0.0
        %1706 = vmatprep.subr.mxu0 0.0
        %1707 = vmatpush1.msra.mxu0 0.0
        %1708 = vmatprep.subr.mxu0 0.0
        %1709 = vmatpush1.msra.mxu0 0.0
        %1710 = vmatprep.subr.mxu0 0.0
        %1711 = vmatpush1.msra.mxu0 0.0
        %1712 = vmatprep.subr.mxu0 0.0
        %1713 = vmatpush1.msra.mxu0 0.0
        %1714 = vmatprep.subr.mxu0 0.0
        %1715 = vmatpush1.msra.mxu0 0.0
        %1716 = vmatprep.subr.mxu0 0.0
        %1717 = vmatpush1.msra.mxu0 0.0
        %1718 = vmatprep.subr.mxu0 0.0
        %1719 = vmatpush1.msra.mxu0 0.0
        %1720 = vmatprep.subr.mxu0 0.0
        %1721 = vmatpush1.msra.mxu0 0.0
        %1722 = vmatprep.subr.mxu0 0.0
        %1723 = vmatpush1.msra.mxu0 0.0
        %1724 = vmatprep.subr.mxu0 0.0
        %1725 = vmatpush1.msra.mxu0 0.0
        %1726 = vmatprep.subr.mxu0 0.0
        %1727 = vmatpush1.msra.mxu0 0.0
        %1728 = vmatprep.subr.mxu0 0.0
        %1729 = vmatpush1.msra.mxu0 0.0
        %1730 = vmatprep.subr.mxu0 0.0
        %1731 = vmatpush1.msra.mxu0 0.0
        %1732 = vmatprep.subr.mxu0 0.0
        %1733 = vmatpush1.msra.mxu0 0.0
        %1734 = vmatprep.subr.mxu0 0.0
        %1735 = vmatpush1.msra.mxu0 0.0
        %1736 = vmatprep.subr.mxu0 0.0
        %1737 = vmatpush1.msra.mxu0 0.0
        %1738 = vmatprep.subr.mxu0 0.0
        %1739 = vmatpush1.msra.mxu0 0.0
        %1740 = vmatprep.subr.mxu0 0.0
        %1741 = vmatpush1.msra.mxu0 0.0
        %1742 = vmatprep.subr.mxu0 0.0
        %1743 = vmatpush1.msra.mxu0 0.0
        %1744 = vmatprep.subr.mxu0 0.0
        %1745 = vmatpush1.msra.mxu0 0.0
        %1746 = vmatprep.subr.mxu0 0.0
        %1747 = vmatpush1.msra.mxu0 0.0
        %1748 = vmatprep.subr.mxu0 0.0
        %1749 = vmatpush1.msra.mxu0 0.0
        %1750 = vmatprep.subr.mxu0 0.0
        %1751 = vmatpush1.msra.mxu0 0.0
        %1752 = vmatprep.mubr.f32.mxu0 0.0
        %v1753 = vand.u32 %v1018, 4294901760
        %1754 = vmatmul.mubr.f32.gmra.mrb[0].mxu0 %v1753
        %v1755 = vpop.f32.mrb[0].mxu0
        %v1756 = vadd.f32 %v1641, %v1755
        %v1757 = vpop.f32.mrb[0].mxu0
        %1758 = vmatprep.mubr.f32.mxu0 0.0
        %v1759 = vand.u32 %v1021, 4294901760
        %1760 = vmatmul.mubr.f32.gmra.mrb[0].mxu0 %v1759
        %v1761 = vpop.f32.mrb[0].mxu0
        %v1762 = vadd.f32 %v1647, %v1761
        %v1763 = vpop.f32.mrb[0].mxu0
        %1764 = vmatprep.mubr.f32.mxu0 0.0
        %v1765 = vand.u32 %v1024, 4294901760
        %1766 = vmatmul.mubr.f32.gmra.mrb[0].mxu0 %v1765
        %v1767 = vpop.f32.mrb[0].mxu0
        %v1768 = vadd.f32 %v1653, %v1767
        %v1769 = vpop.f32.mrb[0].mxu0
        %1770 = vmatprep.mubr.f32.mxu0 0.0
        %v1771 = vand.u32 %v1027, 4294901760
        %1772 = vmatmul.mubr.f32.gmra.mrb[0].mxu0 %v1771
        %v1773 = vpop.f32.mrb[0].mxu0
        %v1774 = vadd.f32 %v1659, %v1773
        %v1775 = vpop.f32.mrb[0].mxu0
        %1776 = vmatprep.mubr.f32.mxu0 0.0
        %v1777 = vand.u32 %v1030, 4294901760
        %1778 = vmatmul.mubr.f32.gmra.mrb[0].mxu0 %v1777
        %v1779 = vpop.f32.mrb[0].mxu0
        %v1780 = vadd.f32 %v1665, %v1779
        %v1781 = vpop.f32.mrb[0].mxu0
        %1782 = vmatprep.mubr.f32.mxu0 0.0
        %v1783 = vand.u32 %v1033, 4294901760
        %1784 = vmatmul.mubr.f32.gmra.mrb[0].mxu0 %v1783
        %v1785 = vpop.f32.mrb[0].mxu0
        %v1786 = vadd.f32 %v1671, %v1785
        %v1787 = vpop.f32.mrb[0].mxu0
        %1788 = vmatprep.mubr.f32.mxu0 0.0
        %v1789 = vand.u32 %v1036, 4294901760
        %1790 = vmatmul.mubr.f32.gmra.mrb[0].mxu0 %v1789
        %v1791 = vpop.f32.mrb[0].mxu0
        %v1792 = vadd.f32 %v1677, %v1791
        %v1793 = vpop.f32.mrb[0].mxu0
        %1794 = vmatprep.mubr.f32.mxu0 0.0
        %v1795 = vand.u32 %v1039, 4294901760
        %1796 = vmatmul.mubr.f32.gmra.mrb[0].mxu0 %v1795
        %v1797 = vpop.f32.mrb[0].mxu0
        %v1798 = vadd.f32 %v1683, %v1797
        %v1799 = vpop.f32.mrb[0].mxu0
        %1800 = vdwg.mxu0
        %v1801 = vld [vmem:[#allocation9] sm:$0xff]
        %v1802 = vld [vmem:[#allocation9 + $0x8] sm:$0xff]
        %vm1803 = vcmask 523264
        %v1805 = vsel %vm1803, %v1801, 0
        %v1808 = vsel %vm1803, %v1802, 0
        %1810 = vmatprep.subr.mxu0 0.0
        %v1811 = vand.u32 %v1756, 4294901760
        %1812 = vmatpush1.msra.mxu0 %v1811
        %1813 = vmatprep.subr.mxu0 0.0
        %v1814 = vand.u32 %v1762, 4294901760
        %1815 = vmatpush1.msra.mxu0 %v1814
        %1816 = vmatprep.subr.mxu0 0.0
        %v1817 = vand.u32 %v1768, 4294901760
        %1818 = vmatpush1.msra.mxu0 %v1817
        %1819 = vmatprep.subr.mxu0 0.0
        %v1820 = vand.u32 %v1774, 4294901760
        %1821 = vmatpush1.msra.mxu0 %v1820
        %1822 = vmatprep.subr.mxu0 0.0
        %v1823 = vand.u32 %v1780, 4294901760
        %1824 = vmatpush1.msra.mxu0 %v1823
        %1825 = vmatprep.subr.mxu0 0.0
        %v1826 = vand.u32 %v1786, 4294901760
        %1827 = vmatpush1.msra.mxu0 %v1826
        %1828 = vmatprep.subr.mxu0 0.0
        %v1829 = vand.u32 %v1792, 4294901760
        %1830 = vmatpush1.msra.mxu0 %v1829
        %1831 = vmatprep.subr.mxu0 0.0
        %v1832 = vand.u32 %v1798, 4294901760
        %1833 = vmatpush1.msra.mxu0 %v1832
        %1834 = vmatprep.subr.mxu0 0.0
        %1835 = vmatpush1.msra.mxu0 0.0
        %1836 = vmatprep.subr.mxu0 0.0
        %1837 = vmatpush1.msra.mxu0 0.0
        %1838 = vmatprep.subr.mxu0 0.0
        %1839 = vmatpush1.msra.mxu0 0.0
        %1840 = vmatprep.subr.mxu0 0.0
        %1841 = vmatpush1.msra.mxu0 0.0
        %1842 = vmatprep.subr.mxu0 0.0
        %1843 = vmatpush1.msra.mxu0 0.0
        %1844 = vmatprep.subr.mxu0 0.0
        %1845 = vmatpush1.msra.mxu0 0.0
        %1846 = vmatprep.subr.mxu0 0.0
        %1847 = vmatpush1.msra.mxu0 0.0
        %1848 = vmatprep.subr.mxu0 0.0
        %1849 = vmatpush1.msra.mxu0 0.0
        %1850 = vmatprep.subr.mxu0 0.0
        %1851 = vmatpush1.msra.mxu0 0.0
        %1852 = vmatprep.subr.mxu0 0.0
        %1853 = vmatpush1.msra.mxu0 0.0
        %1854 = vmatprep.subr.mxu0 0.0
        %1855 = vmatpush1.msra.mxu0 0.0
        %1856 = vmatprep.subr.mxu0 0.0
        %1857 = vmatpush1.msra.mxu0 0.0
        %1858 = vmatprep.subr.mxu0 0.0
        %1859 = vmatpush1.msra.mxu0 0.0
        %1860 = vmatprep.subr.mxu0 0.0
        %1861 = vmatpush1.msra.mxu0 0.0
        %1862 = vmatprep.subr.mxu0 0.0
        %1863 = vmatpush1.msra.mxu0 0.0
        %1864 = vmatprep.subr.mxu0 0.0
        %1865 = vmatpush1.msra.mxu0 0.0
        %1866 = vmatprep.subr.mxu0 0.0
        %1867 = vmatpush1.msra.mxu0 0.0
        %1868 = vmatprep.subr.mxu0 0.0
        %1869 = vmatpush1.msra.mxu0 0.0
        %1870 = vmatprep.subr.mxu0 0.0
        %1871 = vmatpush1.msra.mxu0 0.0
        %1872 = vmatprep.subr.mxu0 0.0
        %1873 = vmatpush1.msra.mxu0 0.0
        %1874 = vmatprep.subr.mxu0 0.0
        %1875 = vmatpush1.msra.mxu0 0.0
        %1876 = vmatprep.subr.mxu0 0.0
        %1877 = vmatpush1.msra.mxu0 0.0
        %1878 = vmatprep.subr.mxu0 0.0
        %1879 = vmatpush1.msra.mxu0 0.0
        %1880 = vmatprep.subr.mxu0 0.0
        %1881 = vmatpush1.msra.mxu0 0.0
        %1882 = vmatprep.mubr.f32.mxu0 0.0
        %v1883 = vand.u32 %v1805, 4294901760
        %v1884 = vsub.f32 %v1805, %v1883
        %v1885 = vand.u32 %v1884, 4294901760
        %v1886 = vsub.f32 %v1884, %v1885
        %v1887 = vand.u32 %v1886, 4294901760
        %1888 = vmatmul.mubr.f32.gmra.mrb[0].mxu0 %v1887
        %v1889 = vpop.f32.mrb[0].mxu0
        %v1890 = vadd.f32 0.0, %v1889
        %v1891 = vpop.f32.mrb[0].mxu0
        %1892 = vmatprep.mubr.f32.mxu0 0.0
        %v1893 = vand.u32 %v1808, 4294901760
        %v1894 = vsub.f32 %v1808, %v1893
        %v1895 = vand.u32 %v1894, 4294901760
        %v1896 = vsub.f32 %v1894, %v1895
        %v1897 = vand.u32 %v1896, 4294901760
        %1898 = vmatmul.mubr.f32.gmra.mrb[0].mxu0 %v1897
        %v1899 = vpop.f32.mrb[0].mxu0
        %v1900 = vadd.f32 0.0, %v1899
        %v1901 = vpop.f32.mrb[0].mxu0
        %1902 = vdwg.mxu0
        %1903 = vmatprep.subr.mxu0 0.0
        %v1904 = vand.u32 %v1756, 4294901760
        %v1905 = vsub.f32 %v1756, %v1904
        %v1906 = vand.u32 %v1905, 4294901760
        %v1907 = vsub.f32 %v1905, %v1906
        %v1908 = vand.u32 %v1907, 4294901760
        %1909 = vmatpush1.msra.mxu0 %v1908
        %1910 = vmatprep.subr.mxu0 0.0
        %v1911 = vand.u32 %v1762, 4294901760
        %v1912 = vsub.f32 %v1762, %v1911
        %v1913 = vand.u32 %v1912, 4294901760
        %v1914 = vsub.f32 %v1912, %v1913
        %v1915 = vand.u32 %v1914, 4294901760
        %1916 = vmatpush1.msra.mxu0 %v1915
        %1917 = vmatprep.subr.mxu0 0.0
        %v1918 = vand.u32 %v1768, 4294901760
        %v1919 = vsub.f32 %v1768, %v1918
        %v1920 = vand.u32 %v1919, 4294901760
        %v1921 = vsub.f32 %v1919, %v1920
        %v1922 = vand.u32 %v1921, 4294901760
        %1923 = vmatpush1.msra.mxu0 %v1922
        %1924 = vmatprep.subr.mxu0 0.0
        %v1925 = vand.u32 %v1774, 4294901760
        %v1926 = vsub.f32 %v1774, %v1925
        %v1927 = vand.u32 %v1926, 4294901760
        %v1928 = vsub.f32 %v1926, %v1927
        %v1929 = vand.u32 %v1928, 4294901760
        %1930 = vmatpush1.msra.mxu0 %v1929
        %1931 = vmatprep.subr.mxu0 0.0
        %v1932 = vand.u32 %v1780, 4294901760
        %v1933 = vsub.f32 %v1780, %v1932
        %v1934 = vand.u32 %v1933, 4294901760
        %v1935 = vsub.f32 %v1933, %v1934
        %v1936 = vand.u32 %v1935, 4294901760
        %1937 = vmatpush1.msra.mxu0 %v1936
        %1938 = vmatprep.subr.mxu0 0.0
        %v1939 = vand.u32 %v1786, 4294901760
        %v1940 = vsub.f32 %v1786, %v1939
        %v1941 = vand.u32 %v1940, 4294901760
        %v1942 = vsub.f32 %v1940, %v1941
        %v1943 = vand.u32 %v1942, 4294901760
        %1944 = vmatpush1.msra.mxu0 %v1943
        %1945 = vmatprep.subr.mxu0 0.0
        %v1946 = vand.u32 %v1792, 4294901760
        %v1947 = vsub.f32 %v1792, %v1946
        %v1948 = vand.u32 %v1947, 4294901760
        %v1949 = vsub.f32 %v1947, %v1948
        %v1950 = vand.u32 %v1949, 4294901760
        %1951 = vmatpush1.msra.mxu0 %v1950
        %1952 = vmatprep.subr.mxu0 0.0
        %v1953 = vand.u32 %v1798, 4294901760
        %v1954 = vsub.f32 %v1798, %v1953
        %v1955 = vand.u32 %v1954, 4294901760
        %v1956 = vsub.f32 %v1954, %v1955
        %v1957 = vand.u32 %v1956, 4294901760
        %1958 = vmatpush1.msra.mxu0 %v1957
        %1959 = vmatprep.subr.mxu0 0.0
        %1960 = vmatpush1.msra.mxu0 0.0
        %1961 = vmatprep.subr.mxu0 0.0
        %1962 = vmatpush1.msra.mxu0 0.0
        %1963 = vmatprep.subr.mxu0 0.0
        %1964 = vmatpush1.msra.mxu0 0.0
        %1965 = vmatprep.subr.mxu0 0.0
        %1966 = vmatpush1.msra.mxu0 0.0
        %1967 = vmatprep.subr.mxu0 0.0
        %1968 = vmatpush1.msra.mxu0 0.0
        %1969 = vmatprep.subr.mxu0 0.0
        %1970 = vmatpush1.msra.mxu0 0.0
        %1971 = vmatprep.subr.mxu0 0.0
        %1972 = vmatpush1.msra.mxu0 0.0
        %1973 = vmatprep.subr.mxu0 0.0
        %1974 = vmatpush1.msra.mxu0 0.0
        %1975 = vmatprep.subr.mxu0 0.0
        %1976 = vmatpush1.msra.mxu0 0.0
        %1977 = vmatprep.subr.mxu0 0.0
        %1978 = vmatpush1.msra.mxu0 0.0
        %1979 = vmatprep.subr.mxu0 0.0
        %1980 = vmatpush1.msra.mxu0 0.0
        %1981 = vmatprep.subr.mxu0 0.0
        %1982 = vmatpush1.msra.mxu0 0.0
        %1983 = vmatprep.subr.mxu0 0.0
        %1984 = vmatpush1.msra.mxu0 0.0
        %1985 = vmatprep.subr.mxu0 0.0
        %1986 = vmatpush1.msra.mxu0 0.0
        %1987 = vmatprep.subr.mxu0 0.0
        %1988 = vmatpush1.msra.mxu0 0.0
        %1989 = vmatprep.subr.mxu0 0.0
        %1990 = vmatpush1.msra.mxu0 0.0
        %1991 = vmatprep.subr.mxu0 0.0
        %1992 = vmatpush1.msra.mxu0 0.0
        %1993 = vmatprep.subr.mxu0 0.0
        %1994 = vmatpush1.msra.mxu0 0.0
        %1995 = vmatprep.subr.mxu0 0.0
        %1996 = vmatpush1.msra.mxu0 0.0
        %1997 = vmatprep.subr.mxu0 0.0
        %1998 = vmatpush1.msra.mxu0 0.0
        %1999 = vmatprep.subr.mxu0 0.0
        %2000 = vmatpush1.msra.mxu0 0.0
        %2001 = vmatprep.subr.mxu0 0.0
        %2002 = vmatpush1.msra.mxu0 0.0
        %2003 = vmatprep.subr.mxu0 0.0
        %2004 = vmatpush1.msra.mxu0 0.0
        %2005 = vmatprep.subr.mxu0 0.0
        %2006 = vmatpush1.msra.mxu0 0.0
        %2007 = vmatprep.mubr.f32.mxu0 0.0
        %v2008 = vand.u32 %v1805, 4294901760
        %2009 = vmatmul.mubr.f32.gmra.mrb[0].mxu0 %v2008
        %v2010 = vpop.f32.mrb[0].mxu0
        %v2011 = vadd.f32 %v1890, %v2010
        %v2012 = vpop.f32.mrb[0].mxu0
        %2013 = vmatprep.mubr.f32.mxu0 0.0
        %v2014 = vand.u32 %v1808, 4294901760
        %2015 = vmatmul.mubr.f32.gmra.mrb[0].mxu0 %v2014
        %v2016 = vpop.f32.mrb[0].mxu0
        %v2017 = vadd.f32 %v1900, %v2016
        %v2018 = vpop.f32.mrb[0].mxu0
        %2019 = vdwg.mxu0
        %2020 = vmatprep.subr.mxu0 0.0
        %v2021 = vand.u32 %v1756, 4294901760
        %v2022 = vsub.f32 %v1756, %v2021
        %2023 = vmatpush1.msra.mxu0 %v2022
        %2024 = vmatprep.subr.mxu0 0.0
        %v2025 = vand.u32 %v1762, 4294901760
        %v2026 = vsub.f32 %v1762, %v2025
        %2027 = vmatpush1.msra.mxu0 %v2026
        %2028 = vmatprep.subr.mxu0 0.0
        %v2029 = vand.u32 %v1768, 4294901760
        %v2030 = vsub.f32 %v1768, %v2029
        %2031 = vmatpush1.msra.mxu0 %v2030
        %2032 = vmatprep.subr.mxu0 0.0
        %v2033 = vand.u32 %v1774, 4294901760
        %v2034 = vsub.f32 %v1774, %v2033
        %2035 = vmatpush1.msra.mxu0 %v2034
        %2036 = vmatprep.subr.mxu0 0.0
        %v2037 = vand.u32 %v1780, 4294901760
        %v2038 = vsub.f32 %v1780, %v2037
        %2039 = vmatpush1.msra.mxu0 %v2038
        %2040 = vmatprep.subr.mxu0 0.0
        %v2041 = vand.u32 %v1786, 4294901760
        %v2042 = vsub.f32 %v1786, %v2041
        %2043 = vmatpush1.msra.mxu0 %v2042
        %2044 = vmatprep.subr.mxu0 0.0
        %v2045 = vand.u32 %v1792, 4294901760
        %v2046 = vsub.f32 %v1792, %v2045
        %2047 = vmatpush1.msra.mxu0 %v2046
        %2048 = vmatprep.subr.mxu0 0.0
        %v2049 = vand.u32 %v1798, 4294901760
        %v2050 = vsub.f32 %v1798, %v2049
        %2051 = vmatpush1.msra.mxu0 %v2050
        %2052 = vmatprep.subr.mxu0 0.0
        %2053 = vmatpush1.msra.mxu0 0.0
        %2054 = vmatprep.subr.mxu0 0.0
        %2055 = vmatpush1.msra.mxu0 0.0
        %2056 = vmatprep.subr.mxu0 0.0
        %2057 = vmatpush1.msra.mxu0 0.0
        %2058 = vmatprep.subr.mxu0 0.0
        %2059 = vmatpush1.msra.mxu0 0.0
        %2060 = vmatprep.subr.mxu0 0.0
        %2061 = vmatpush1.msra.mxu0 0.0
        %2062 = vmatprep.subr.mxu0 0.0
        %2063 = vmatpush1.msra.mxu0 0.0
        %2064 = vmatprep.subr.mxu0 0.0
        %2065 = vmatpush1.msra.mxu0 0.0
        %2066 = vmatprep.subr.mxu0 0.0
        %2067 = vmatpush1.msra.mxu0 0.0
        %2068 = vmatprep.subr.mxu0 0.0
        %2069 = vmatpush1.msra.mxu0 0.0
        %2070 = vmatprep.subr.mxu0 0.0
        %2071 = vmatpush1.msra.mxu0 0.0
        %2072 = vmatprep.subr.mxu0 0.0
        %2073 = vmatpush1.msra.mxu0 0.0
        %2074 = vmatprep.subr.mxu0 0.0
        %2075 = vmatpush1.msra.mxu0 0.0
        %2076 = vmatprep.subr.mxu0 0.0
        %2077 = vmatpush1.msra.mxu0 0.0
        %2078 = vmatprep.subr.mxu0 0.0
        %2079 = vmatpush1.msra.mxu0 0.0
        %2080 = vmatprep.subr.mxu0 0.0
        %2081 = vmatpush1.msra.mxu0 0.0
        %2082 = vmatprep.subr.mxu0 0.0
        %2083 = vmatpush1.msra.mxu0 0.0
        %2084 = vmatprep.subr.mxu0 0.0
        %2085 = vmatpush1.msra.mxu0 0.0
        %2086 = vmatprep.subr.mxu0 0.0
        %2087 = vmatpush1.msra.mxu0 0.0
        %2088 = vmatprep.subr.mxu0 0.0
        %2089 = vmatpush1.msra.mxu0 0.0
        %2090 = vmatprep.subr.mxu0 0.0
        %2091 = vmatpush1.msra.mxu0 0.0
        %2092 = vmatprep.subr.mxu0 0.0
        %2093 = vmatpush1.msra.mxu0 0.0
        %2094 = vmatprep.subr.mxu0 0.0
        %2095 = vmatpush1.msra.mxu0 0.0
        %2096 = vmatprep.subr.mxu0 0.0
        %2097 = vmatpush1.msra.mxu0 0.0
        %2098 = vmatprep.subr.mxu0 0.0
        %2099 = vmatpush1.msra.mxu0 0.0
        %2100 = vmatprep.mubr.f32.mxu0 0.0
        %v2101 = vand.u32 %v1805, 4294901760
        %v2102 = vsub.f32 %v1805, %v2101
        %2103 = vmatmul.mubr.f32.gmra.mrb[0].mxu0 %v2102
        %v2104 = vpop.f32.mrb[0].mxu0
        %v2105 = vadd.f32 %v2011, %v2104
        %v2106 = vpop.f32.mrb[0].mxu0
        %2107 = vmatprep.mubr.f32.mxu0 0.0
        %v2108 = vand.u32 %v1808, 4294901760
        %v2109 = vsub.f32 %v1808, %v2108
        %2110 = vmatmul.mubr.f32.gmra.mrb[0].mxu0 %v2109
        %v2111 = vpop.f32.mrb[0].mxu0
        %v2112 = vadd.f32 %v2017, %v2111
        %v2113 = vpop.f32.mrb[0].mxu0
        %2114 = vdwg.mxu0
        %2115 = vmatprep.subr.mxu0 0.0
        %v2116 = vand.u32 %v1756, 4294901760
        %2117 = vmatpush1.msra.mxu0 %v2116
        %2118 = vmatprep.subr.mxu0 0.0
        %v2119 = vand.u32 %v1762, 4294901760
        %2120 = vmatpush1.msra.mxu0 %v2119
        %2121 = vmatprep.subr.mxu0 0.0
        %v2122 = vand.u32 %v1768, 4294901760
        %2123 = vmatpush1.msra.mxu0 %v2122
        %2124 = vmatprep.subr.mxu0 0.0
        %v2125 = vand.u32 %v1774, 4294901760
        %2126 = vmatpush1.msra.mxu0 %v2125
        %2127 = vmatprep.subr.mxu0 0.0
        %v2128 = vand.u32 %v1780, 4294901760
        %2129 = vmatpush1.msra.mxu0 %v2128
        %2130 = vmatprep.subr.mxu0 0.0
        %v2131 = vand.u32 %v1786, 4294901760
        %2132 = vmatpush1.msra.mxu0 %v2131
        %2133 = vmatprep.subr.mxu0 0.0
        %v2134 = vand.u32 %v1792, 4294901760
        %2135 = vmatpush1.msra.mxu0 %v2134
        %2136 = vmatprep.subr.mxu0 0.0
        %v2137 = vand.u32 %v1798, 4294901760
        %2138 = vmatpush1.msra.mxu0 %v2137
        %2139 = vmatprep.subr.mxu0 0.0
        %2140 = vmatpush1.msra.mxu0 0.0
        %2141 = vmatprep.subr.mxu0 0.0
        %2142 = vmatpush1.msra.mxu0 0.0
        %2143 = vmatprep.subr.mxu0 0.0
        %2144 = vmatpush1.msra.mxu0 0.0
        %2145 = vmatprep.subr.mxu0 0.0
        %2146 = vmatpush1.msra.mxu0 0.0
        %2147 = vmatprep.subr.mxu0 0.0
        %2148 = vmatpush1.msra.mxu0 0.0
        %2149 = vmatprep.subr.mxu0 0.0
        %2150 = vmatpush1.msra.mxu0 0.0
        %2151 = vmatprep.subr.mxu0 0.0
        %2152 = vmatpush1.msra.mxu0 0.0
        %2153 = vmatprep.subr.mxu0 0.0
        %2154 = vmatpush1.msra.mxu0 0.0
        %2155 = vmatprep.subr.mxu0 0.0
        %2156 = vmatpush1.msra.mxu0 0.0
        %2157 = vmatprep.subr.mxu0 0.0
        %2158 = vmatpush1.msra.mxu0 0.0
        %2159 = vmatprep.subr.mxu0 0.0
        %2160 = vmatpush1.msra.mxu0 0.0
        %2161 = vmatprep.subr.mxu0 0.0
        %2162 = vmatpush1.msra.mxu0 0.0
        %2163 = vmatprep.subr.mxu0 0.0
        %2164 = vmatpush1.msra.mxu0 0.0
        %2165 = vmatprep.subr.mxu0 0.0
        %2166 = vmatpush1.msra.mxu0 0.0
        %2167 = vmatprep.subr.mxu0 0.0
        %2168 = vmatpush1.msra.mxu0 0.0
        %2169 = vmatprep.subr.mxu0 0.0
        %2170 = vmatpush1.msra.mxu0 0.0
        %2171 = vmatprep.subr.mxu0 0.0
        %2172 = vmatpush1.msra.mxu0 0.0
        %2173 = vmatprep.subr.mxu0 0.0
        %2174 = vmatpush1.msra.mxu0 0.0
        %2175 = vmatprep.subr.mxu0 0.0
        %2176 = vmatpush1.msra.mxu0 0.0
        %2177 = vmatprep.subr.mxu0 0.0
        %2178 = vmatpush1.msra.mxu0 0.0
        %2179 = vmatprep.subr.mxu0 0.0
        %2180 = vmatpush1.msra.mxu0 0.0
        %2181 = vmatprep.subr.mxu0 0.0
        %2182 = vmatpush1.msra.mxu0 0.0
        %2183 = vmatprep.subr.mxu0 0.0
        %2184 = vmatpush1.msra.mxu0 0.0
        %2185 = vmatprep.subr.mxu0 0.0
        %2186 = vmatpush1.msra.mxu0 0.0
        %2187 = vmatprep.mubr.f32.mxu0 0.0
        %v2188 = vand.u32 %v1805, 4294901760
        %v2189 = vsub.f32 %v1805, %v2188
        %v2190 = vand.u32 %v2189, 4294901760
        %2191 = vmatmul.mubr.f32.gmra.mrb[0].mxu0 %v2190
        %v2192 = vpop.f32.mrb[0].mxu0
        %v2193 = vadd.f32 %v2105, %v2192
        %v2194 = vpop.f32.mrb[0].mxu0
        %2195 = vmatprep.mubr.f32.mxu0 0.0
        %v2196 = vand.u32 %v1808, 4294901760
        %v2197 = vsub.f32 %v1808, %v2196
        %v2198 = vand.u32 %v2197, 4294901760
        %2199 = vmatmul.mubr.f32.gmra.mrb[0].mxu0 %v2198
        %v2200 = vpop.f32.mrb[0].mxu0
        %v2201 = vadd.f32 %v2112, %v2200
        %v2202 = vpop.f32.mrb[0].mxu0
        %2203 = vdwg.mxu0
        %2204 = vmatprep.subr.mxu0 0.0
        %v2205 = vand.u32 %v1756, 4294901760
        %v2206 = vsub.f32 %v1756, %v2205
        %v2207 = vand.u32 %v2206, 4294901760
        %2208 = vmatpush1.msra.mxu0 %v2207
        %2209 = vmatprep.subr.mxu0 0.0
        %v2210 = vand.u32 %v1762, 4294901760
        %v2211 = vsub.f32 %v1762, %v2210
        %v2212 = vand.u32 %v2211, 4294901760
        %2213 = vmatpush1.msra.mxu0 %v2212
        %2214 = vmatprep.subr.mxu0 0.0
        %v2215 = vand.u32 %v1768, 4294901760
        %v2216 = vsub.f32 %v1768, %v2215
        %v2217 = vand.u32 %v2216, 4294901760
        %2218 = vmatpush1.msra.mxu0 %v2217
        %2219 = vmatprep.subr.mxu0 0.0
        %v2220 = vand.u32 %v1774, 4294901760
        %v2221 = vsub.f32 %v1774, %v2220
        %v2222 = vand.u32 %v2221, 4294901760
        %2223 = vmatpush1.msra.mxu0 %v2222
        %2224 = vmatprep.subr.mxu0 0.0
        %v2225 = vand.u32 %v1780, 4294901760
        %v2226 = vsub.f32 %v1780, %v2225
        %v2227 = vand.u32 %v2226, 4294901760
        %2228 = vmatpush1.msra.mxu0 %v2227
        %2229 = vmatprep.subr.mxu0 0.0
        %v2230 = vand.u32 %v1786, 4294901760
        %v2231 = vsub.f32 %v1786, %v2230
        %v2232 = vand.u32 %v2231, 4294901760
        %2233 = vmatpush1.msra.mxu0 %v2232
        %2234 = vmatprep.subr.mxu0 0.0
        %v2235 = vand.u32 %v1792, 4294901760
        %v2236 = vsub.f32 %v1792, %v2235
        %v2237 = vand.u32 %v2236, 4294901760
        %2238 = vmatpush1.msra.mxu0 %v2237
        %2239 = vmatprep.subr.mxu0 0.0
        %v2240 = vand.u32 %v1798, 4294901760
        %v2241 = vsub.f32 %v1798, %v2240
        %v2242 = vand.u32 %v2241, 4294901760
        %2243 = vmatpush1.msra.mxu0 %v2242
        %2244 = vmatprep.subr.mxu0 0.0
        %2245 = vmatpush1.msra.mxu0 0.0
        %2246 = vmatprep.subr.mxu0 0.0
        %2247 = vmatpush1.msra.mxu0 0.0
        %2248 = vmatprep.subr.mxu0 0.0
        %2249 = vmatpush1.msra.mxu0 0.0
        %2250 = vmatprep.subr.mxu0 0.0
        %2251 = vmatpush1.msra.mxu0 0.0
        %2252 = vmatprep.subr.mxu0 0.0
        %2253 = vmatpush1.msra.mxu0 0.0
        %2254 = vmatprep.subr.mxu0 0.0
        %2255 = vmatpush1.msra.mxu0 0.0
        %2256 = vmatprep.subr.mxu0 0.0
        %2257 = vmatpush1.msra.mxu0 0.0
        %2258 = vmatprep.subr.mxu0 0.0
        %2259 = vmatpush1.msra.mxu0 0.0
        %2260 = vmatprep.subr.mxu0 0.0
        %2261 = vmatpush1.msra.mxu0 0.0
        %2262 = vmatprep.subr.mxu0 0.0
        %2263 = vmatpush1.msra.mxu0 0.0
        %2264 = vmatprep.subr.mxu0 0.0
        %2265 = vmatpush1.msra.mxu0 0.0
        %2266 = vmatprep.subr.mxu0 0.0
        %2267 = vmatpush1.msra.mxu0 0.0
        %2268 = vmatprep.subr.mxu0 0.0
        %2269 = vmatpush1.msra.mxu0 0.0
        %2270 = vmatprep.subr.mxu0 0.0
        %2271 = vmatpush1.msra.mxu0 0.0
        %2272 = vmatprep.subr.mxu0 0.0
        %2273 = vmatpush1.msra.mxu0 0.0
        %2274 = vmatprep.subr.mxu0 0.0
        %2275 = vmatpush1.msra.mxu0 0.0
        %2276 = vmatprep.subr.mxu0 0.0
        %2277 = vmatpush1.msra.mxu0 0.0
        %2278 = vmatprep.subr.mxu0 0.0
        %2279 = vmatpush1.msra.mxu0 0.0
        %2280 = vmatprep.subr.mxu0 0.0
        %2281 = vmatpush1.msra.mxu0 0.0
        %2282 = vmatprep.subr.mxu0 0.0
        %2283 = vmatpush1.msra.mxu0 0.0
        %2284 = vmatprep.subr.mxu0 0.0
        %2285 = vmatpush1.msra.mxu0 0.0
        %2286 = vmatprep.subr.mxu0 0.0
        %2287 = vmatpush1.msra.mxu0 0.0
        %2288 = vmatprep.subr.mxu0 0.0
        %2289 = vmatpush1.msra.mxu0 0.0
        %2290 = vmatprep.subr.mxu0 0.0
        %2291 = vmatpush1.msra.mxu0 0.0
        %2292 = vmatprep.mubr.f32.mxu0 0.0
        %v2293 = vand.u32 %v1805, 4294901760
        %2294 = vmatmul.mubr.f32.gmra.mrb[0].mxu0 %v2293
        %v2295 = vpop.f32.mrb[0].mxu0
        %v2296 = vadd.f32 %v2193, %v2295
        %v2297 = vpop.f32.mrb[0].mxu0
        %2298 = vmatprep.mubr.f32.mxu0 0.0
        %v2299 = vand.u32 %v1808, 4294901760
        %2300 = vmatmul.mubr.f32.gmra.mrb[0].mxu0 %v2299
        %v2301 = vpop.f32.mrb[0].mxu0
        %v2302 = vadd.f32 %v2201, %v2301
        %v2303 = vpop.f32.mrb[0].mxu0
        %2304 = vdwg.mxu0
        %2305 = vmatprep.subr.mxu0 0.0
        %v2306 = vand.u32 %v1756, 4294901760
        %2307 = vmatpush1.msra.mxu0 %v2306
        %2308 = vmatprep.subr.mxu0 0.0
        %v2309 = vand.u32 %v1762, 4294901760
        %2310 = vmatpush1.msra.mxu0 %v2309
        %2311 = vmatprep.subr.mxu0 0.0
        %v2312 = vand.u32 %v1768, 4294901760
        %2313 = vmatpush1.msra.mxu0 %v2312
        %2314 = vmatprep.subr.mxu0 0.0
        %v2315 = vand.u32 %v1774, 4294901760
        %2316 = vmatpush1.msra.mxu0 %v2315
        %2317 = vmatprep.subr.mxu0 0.0
        %v2318 = vand.u32 %v1780, 4294901760
        %2319 = vmatpush1.msra.mxu0 %v2318
        %2320 = vmatprep.subr.mxu0 0.0
        %v2321 = vand.u32 %v1786, 4294901760
        %2322 = vmatpush1.msra.mxu0 %v2321
        %2323 = vmatprep.subr.mxu0 0.0
        %v2324 = vand.u32 %v1792, 4294901760
        %2325 = vmatpush1.msra.mxu0 %v2324
        %2326 = vmatprep.subr.mxu0 0.0
        %v2327 = vand.u32 %v1798, 4294901760
        %2328 = vmatpush1.msra.mxu0 %v2327
        %2329 = vmatprep.subr.mxu0 0.0
        %2330 = vmatpush1.msra.mxu0 0.0
        %2331 = vmatprep.subr.mxu0 0.0
        %2332 = vmatpush1.msra.mxu0 0.0
        %2333 = vmatprep.subr.mxu0 0.0
        %2334 = vmatpush1.msra.mxu0 0.0
        %2335 = vmatprep.subr.mxu0 0.0
        %2336 = vmatpush1.msra.mxu0 0.0
        %2337 = vmatprep.subr.mxu0 0.0
        %2338 = vmatpush1.msra.mxu0 0.0
        %2339 = vmatprep.subr.mxu0 0.0
        %2340 = vmatpush1.msra.mxu0 0.0
        %2341 = vmatprep.subr.mxu0 0.0
        %2342 = vmatpush1.msra.mxu0 0.0
        %2343 = vmatprep.subr.mxu0 0.0
        %2344 = vmatpush1.msra.mxu0 0.0
        %2345 = vmatprep.subr.mxu0 0.0
        %2346 = vmatpush1.msra.mxu0 0.0
        %2347 = vmatprep.subr.mxu0 0.0
        %2348 = vmatpush1.msra.mxu0 0.0
        %2349 = vmatprep.subr.mxu0 0.0
        %2350 = vmatpush1.msra.mxu0 0.0
        %2351 = vmatprep.subr.mxu0 0.0
        %2352 = vmatpush1.msra.mxu0 0.0
        %2353 = vmatprep.subr.mxu0 0.0
        %2354 = vmatpush1.msra.mxu0 0.0
        %2355 = vmatprep.subr.mxu0 0.0
        %2356 = vmatpush1.msra.mxu0 0.0
        %2357 = vmatprep.subr.mxu0 0.0
        %2358 = vmatpush1.msra.mxu0 0.0
        %2359 = vmatprep.subr.mxu0 0.0
        %2360 = vmatpush1.msra.mxu0 0.0
        %2361 = vmatprep.subr.mxu0 0.0
        %2362 = vmatpush1.msra.mxu0 0.0
        %2363 = vmatprep.subr.mxu0 0.0
        %2364 = vmatpush1.msra.mxu0 0.0
        %2365 = vmatprep.subr.mxu0 0.0
        %2366 = vmatpush1.msra.mxu0 0.0
        %2367 = vmatprep.subr.mxu0 0.0
        %2368 = vmatpush1.msra.mxu0 0.0
        %2369 = vmatprep.subr.mxu0 0.0
        %2370 = vmatpush1.msra.mxu0 0.0
        %2371 = vmatprep.subr.mxu0 0.0
        %2372 = vmatpush1.msra.mxu0 0.0
        %2373 = vmatprep.subr.mxu0 0.0
        %2374 = vmatpush1.msra.mxu0 0.0
        %2375 = vmatprep.subr.mxu0 0.0
        %2376 = vmatpush1.msra.mxu0 0.0
        %2377 = vmatprep.mubr.f32.mxu0 0.0
        %v2378 = vand.u32 %v1805, 4294901760
        %2379 = vmatmul.mubr.f32.gmra.mrb[0].mxu0 %v2378
        %v2380 = vpop.f32.mrb[0].mxu0
        %v2381 = vadd.f32 %v2296, %v2380
        %v2382 = vpop.f32.mrb[0].mxu0
        %2383 = vmatprep.mubr.f32.mxu0 0.0
        %v2384 = vand.u32 %v1808, 4294901760
        %2385 = vmatmul.mubr.f32.gmra.mrb[0].mxu0 %v2384
        %v2386 = vpop.f32.mrb[0].mxu0
        %v2387 = vadd.f32 %v2302, %v2386
        %v2388 = vpop.f32.mrb[0].mxu0
        %2389 = vdwg.mxu0
        %s2390 = smul.u32 %s31, 16
        %v2391 = vmul.f32 %v2381, 0.00390625
        %v2392 = vmul.f32 %v2387, 0.00390625
        %s2393 = scalar_lea.vmem [#allocation2], %s2390
        %vm2394 = vcmask 31744
        %2395 = vst.msk [vmem:[%s2393] sm:$0xff] %vm2394, %v2391
        %2396 = vst.msk [vmem:[%s2393 + $0x8] sm:$0xff] %vm2394, %v2392
        %p2397 = scmp.eq.s32.totalorder %s31, 0
        // Predicated region
        $region61: #{l_spa.1} parent=39 // pred_check
          %p2398 = pneg %p2397
        $region62: #{l_spa.1} parent=39 // pred_check_branch
          %2400 = sbr.rel (%p2398) target = $region64
        $region63: #{l_spa.1} parent=39 // pred_region
          %v2401 = vld [vmem:[#allocation2] sm:$0xff]
          %v2402 = vld [vmem:[#allocation2 + $0x8] sm:$0xff]
          %vm2403 = vcmask 1047584
          %2404 = vrot.lane.b32.xlu0 %v2401, 4
          %v2405 = vpop.permute.xlu0 %2404
          %v2406 = vsel %vm2403, %v2405, %v2401
          %2407 = vrot.lane.b32.xlu0 %v2402, 4
          %v2408 = vpop.permute.xlu0 %2407
          %v2409 = vsel %vm2403, %v2408, %v2402
          %2410 = vrot.lane.b32.xlu0 %v2406, 4
          %v2411 = vpop.permute.xlu0 %2410
          %2412 = vrot.lane.b32.xlu0 %v2409, 4
          %v2413 = vpop.permute.xlu0 %2412
          %v2414 = vsel %vm2403, %v2411, %v2401
          %v2415 = vsel %vm2403, %v2413, %v2402
          %v2416 = vld [vmem:[#allocation11] sm:$0xff]
          %v2417 = vld [vmem:[#allocation11 + $0x8] sm:$0xff]
          %2420 = vrot.lane.b32.xlu0 %v2416, 3
          %v2421 = vpop.permute.xlu0 %2420
          %2422 = vrot.lane.b32.xlu0 %v2417, 3
          %v2423 = vpop.permute.xlu0 %2422
          %v2426 = vmul.f32 %v2414, %v2421
          %v2427 = vmul.f32 %v2415, %v2423
          %s2428 = scalar_lea.vmem [#allocation11], 16
          %v2429 = vld [vmem:[%s2428] sm:$0xff]
          %v2430 = vld [vmem:[%s2428 + $0x8] sm:$0xff]
          %2433 = vrot.lane.b32.xlu0 %v2429, 1
          %v2434 = vpop.permute.xlu0 %2433
          %2435 = vrot.lane.b32.xlu0 %v2430, 1
          %v2436 = vpop.permute.xlu0 %2435
          %v2439 = vmul.f32 %v2414, %v2434
          %v2440 = vmul.f32 %v2415, %v2436
          %v2441 = vrot.slane %v2401, 7
          %v2442 = vrot.slane %v2402, 7
          %v2443 = vlaneseq
          %v2444 = vshrl.u32 %v2443, 7
          %vm2445 = vcmp.lt.s32.totalorder %v2444, 1
          %v2446 = vsel %vm2445, %v2441, %v2442
          %v2447 = vsel %vm2445, %v2442, %v2441
          %s2448 = scalar_lea.vmem [#allocation11], 32
          %v2449 = vld [vmem:[%s2448] sm:$0xff]
          %v2450 = vld [vmem:[%s2448 + $0x8] sm:$0xff]
          %v2451 = vmul.f32 %v2447, %v2449
          %v2452 = vmul.f32 %v2446, %v2450
          %v2453 = vrot.slane %v2401, 1
          %v2454 = vrot.slane %v2402, 1
          %vm2455 = vcmp.lt.s32.totalorder %v2444, 7
          %v2456 = vsel %vm2455, %v2453, %v2454
          %v2457 = vsel %vm2455, %v2454, %v2453
          %s2458 = scalar_lea.vmem [#allocation11], 48
          %v2459 = vld [vmem:[%s2458] sm:$0xff]
          %v2460 = vld [vmem:[%s2458 + $0x8] sm:$0xff]
          %v2461 = vmul.f32 %v2456, %v2459
          %v2462 = vmul.f32 %v2457, %v2460
          %v2463 = vrot.slane %v2401, 4
          %v2464 = vrot.slane %v2402, 4
          %vm2465 = vcmp.lt.s32.totalorder %v2444, 4
          %v2466 = vsel %vm2465, %v2463, %v2464
          %v2467 = vsel %vm2465, %v2464, %v2463
          %s2468 = scalar_lea.vmem [#allocation11], 64
          %v2469 = vld [vmem:[%s2468] sm:$0xff]
          %v2470 = vld [vmem:[%s2468 + $0x8] sm:$0xff]
          %v2471 = vmul.f32 %v2467, %v2469
          %v2472 = vmul.f32 %v2466, %v2470
          %s2473 = scalar_lea.vmem [#allocation11], 80
          %v2474 = vld [vmem:[%s2473] sm:$0xff]
          %v2475 = vld [vmem:[%s2473 + $0x8] sm:$0xff]
          %v2476 = vmul.f32 %v2466, %v2474
          %v2477 = vmul.f32 %v2467, %v2475
          %2480 = vrot.lane.b32.xlu0 %v2426, 125
          %v2481 = vpop.permute.xlu0 %2480
          %2482 = vrot.lane.b32.xlu0 %v2427, 125
          %v2483 = vpop.permute.xlu0 %2482
          %v2486 = vsub.f32 %v2401, %v2481
          %v2487 = vsub.f32 %v2402, %v2483
          %v2488 = vmul.f32 %v2486, %v2486
          %v2489 = vmul.f32 %v2487, %v2487
          %v2490 = vadd.f32 %v2488, 0.0
          %v2491 = vadd.f32 %v2489, 0.0
          %2494 = vrot.lane.b32.xlu0 %v2439, 127
          %v2495 = vpop.permute.xlu0 %2494
          %2496 = vrot.lane.b32.xlu0 %v2440, 127
          %v2497 = vpop.permute.xlu0 %2496
          %v2500 = vsub.f32 %v2401, %v2495
          %v2501 = vsub.f32 %v2402, %v2497
          %v2502 = vmul.f32 %v2500, %v2500
          %v2503 = vmul.f32 %v2501, %v2501
          %v2504 = vadd.f32 %v2490, %v2502
          %v2505 = vadd.f32 %v2491, %v2503
          %v2506 = vsub.f32 %v2401, %v2451
          %v2507 = vsub.f32 %v2402, %v2452
          %v2508 = vmul.f32 %v2506, %v2506
          %v2509 = vmul.f32 %v2507, %v2507
          %v2510 = vadd.f32 %v2504, %v2508
          %v2511 = vadd.f32 %v2505, %v2509
          %v2512 = vsub.f32 %v2401, %v2461
          %v2513 = vsub.f32 %v2402, %v2462
          %v2514 = vmul.f32 %v2512, %v2512
          %v2515 = vmul.f32 %v2513, %v2513
          %v2516 = vadd.f32 %v2510, %v2514
          %v2517 = vadd.f32 %v2511, %v2515
          %v2518 = vsub.f32 %v2401, %v2471
          %v2519 = vsub.f32 %v2402, %v2472
          %v2520 = vmul.f32 %v2518, %v2518
          %v2521 = vmul.f32 %v2519, %v2519
          %v2522 = vadd.f32 %v2516, %v2520
          %v2523 = vadd.f32 %v2517, %v2521
          %v2524 = vsub.f32 %v2401, %v2476
          %v2525 = vsub.f32 %v2402, %v2477
          %v2526 = vmul.f32 %v2524, %v2524
          %v2527 = vmul.f32 %v2525, %v2525
          %v2528 = vadd.f32 %v2522, %v2526
          %v2529 = vadd.f32 %v2523, %v2527
          %2530 = vst.msk [vmem:[%s347] sm:$0xff] %vm2394, %v2528
          %2531 = vst.msk [vmem:[%s347 + $0x8] sm:$0xff] %vm2394, %v2529
        $region64: #{l_spa.1} parent=39 // pred_fallthru
          _
        %s2532 = sand.u32 %s165, 1
        %s2533 = scalar_lea.sflag [#allocation5], %s2532
        %s2534 = sand.u32 %s165, 1
        %s2535 = smul.addr %s2534, 16
        %s2536 = scalar_lea.vmem [#allocation12], %s2535
        // Predicated region
        $region65: #{l_spa.1} parent=39 // pred_check
          %p2537 = pneg %p175
        $region66: #{l_spa.1} parent=39 // pred_check_branch
          %2539 = sbr.rel (%p2537) target = $region68
        $region67: #{l_spa.1} parent=39 // pred_region
          %s2541 = ssub.s32 256, 256
          %2542 = vsyncadd %s2533, %s2541
          %s2543 = smul.addr %s30, 2
          %s2544 = smul.addr %s2543, 128
          %s2545 = scalar_lea.hbm %s5, %s2544
          %s2546 = sshll.u32 %s2536, 4
          %s2547 = int_to_ptr.vmem [resolvable:$true] %s2546
          %2552 = dma.vmem_to_hbm [thread:$0]  %s2547, 256, %s2545, %s2533, 128, 128, 8
        $region68: #{l_spa.1} parent=39 // pred_fallthru
          _
      $region40: #{l_spa.1} parent=5 // pred_fallthru
        _
      %p2553 = scmp.le.s32.totalorder 2, %s21
      // Predicated region
      $region69: #{l_spa.1} parent=5 // pred_check
        %p2554 = pneg %p2553
      $region70: #{l_spa.1} parent=5 // pred_check_branch
        %2556 = sbr.rel (%p2554) target = $region72
      $region71: #{l_spa.1} parent=5 // pred_region
        %s2557 = ssub.s32 %s21, 2
        // Predicated region
        $region73: #{l_spa.1} parent=71 // pred_check
          %p2558 = pneg %p181
        $region74: #{l_spa.1} parent=71 // pred_check_branch
          %2560 = sbr.rel (%p2558) target = $region76
        $region75: #{l_spa.1} parent=71 // pred_region
          %s2561 = sand.u32 %s166, 1
          %s2562 = scalar_lea.sflag [#allocation5], %s2561
          %s2563 = sand.u32 %s166, 1
          %s2564 = smul.addr %s2563, 16
          %s2565 = scalar_lea.vmem [#allocation12], %s2564
          %2566 = dma.done %s2562, 256
        $region76: #{l_spa.1} parent=71 // pred_fallthru
          _
      $region72: #{l_spa.1} parent=5 // pred_fallthru
        _
    $region6: #{l_spa.1} parent=1 // loop_footer
      %s25 = sadd.s32 1, %s21
    $region7: #{l_spa.1} parent=1 // loop_footer_branch
      %20 = sbr.rel target = $region3
    $region8: #{l_spa.1} parent=1 // loop_exit
      _
    %2567 = vsyncpa [#allocation4], 1
    %s2568 = scalar_lea.sflag [#allocation4], 1
    %2569 = vsyncpa %s2568, 1
    %2570 = vsyncpa [#allocation7], 1
    %s2571 = scalar_lea.sflag [#allocation7], 1
    %2572 = vsyncpa %s2571, 1
    %2573 = vsyncpa [#allocation10], 1
    %2574 = vsyncpa [#allocation5], 1
    %s2575 = scalar_lea.sflag [#allocation5], 1
    %2576 = vsyncpa %s2575, 1

</llo_original>
